<compile_context>
chip_gen: v7x
topology: tpu7x:2x2x1
jax: 0.10.0
libtpu: 0.0.40
codegen_flags: <defaults>
</compile_context>

<pallas_src>
import functools
import math

import jax
import jax.numpy as jnp
from jax.experimental import pallas as pl
from jax.experimental.pallas import tpu as pltpu


def _sigma_cell_kernel(states_ref, h_ref,
                       wgx_ref, wgh_ref, bg_ref, wout_ref, bout_ref,
                       sig2_out_ref, h_out_ref,
                       *, beta: float, scale: float, row_chunk: int, precision):
    f32 = jnp.float32
    tile_b = h_ref.shape[0]

    # Whole-array VMEM weights (single copy, loaded once per grid step).
    wgh = wgh_ref[...]                     # (Hp, Hp) native dtype -> straight to MXU
    wout = wout_ref[...]                   # (Hp, 3)  native dtype -> straight to MXU
    wgx = wgx_ref[...].astype(f32)         # (1, Hp)
    bg = bg_ref[...].astype(f32)           # (1, Hp)
    bout = bout_ref[...].astype(f32)       # (1, 3)

    # Row-chunked body: each chunk's gate matmul (MXU) is independent of the
    # previous chunk's softplus (EUP) and GARCH math (VPU), giving the
    # scheduler independent chains to overlap instead of MXU->EUP->VPU serial.
    for c in range(tile_b // row_chunk):
        rows = pl.ds(c * row_chunk, row_chunk)

        states = states_ref[rows, :].astype(f32)          # (rc, 3)
        x = states[:, 0:1]
        sig2_prev = states[:, 1:2]
        resid_prev = states[:, 2:3]

        # recurrent_gate: cat([x, h], 1) @ W_gate + b_gate, with W_gate split
        # into its input row (wgx) and hidden block (wgh) -> no in-kernel concat.
        gate = (jnp.dot(h_ref[rows, :], wgh,
                        preferred_element_type=f32, precision=precision)
                + x * wgx + bg)                            # (rc, Hp)

        # AdjSoftplus with hoisted constant denominator (scale) and a stable
        # softplus: log(1+exp(z)) == max(z,0) + log(1+exp(-|z|)).
        z = beta * gate
        softplus = jnp.maximum(z, 0.0) + jnp.log(1.0 + jnp.exp(-jnp.abs(z)))
        h_new = softplus * scale                           # (rc, Hp)
        if scale < 0.0:
            # Only needed when the AdjSoftplus denominator is negative
            # (softplus >= 0, so for scale > 0 the outer relu is a no-op).
            h_new = jnp.maximum(h_new, 0.0)

        # output_transform + ReLU as one (rc,Hp)@(Hp,3) MXU matmul (an N=3
        # pass costs the same as N=128, and the MXU has slack here).
        out3 = jnp.dot(h_new.astype(wout.dtype), wout,
                       preferred_element_type=f32, precision=precision) + bout
        out3 = jnp.maximum(out3, 0.0)                      # (rc, 3)
        alpha = out3[:, 0:1]
        beta_g = out3[:, 1:2]
        const = out3[:, 2:3]

        # GARCH update: sig2_t = sig2_prev*alpha + resids_prev^2*beta_g + const
        sig2_t = sig2_prev * alpha + resid_prev * resid_prev * beta_g + const

        sig2_out_ref[rows, :] = sig2_t.astype(sig2_out_ref.dtype)
        h_out_ref[rows, :] = h_new.astype(h_out_ref.dtype)


def sigma_cell_forward(x, h, sig2_prev, resids_prev, params, *,
                       beta: float = 1.0, max_batch_tile: int = 4096,
                       precision=None):
    """Fused SIGMACell forward.

    Args:
      x:            (B, 1) input.
      h:            (B, H) hidden state.
      sig2_prev:    (B, 1) previous conditional variance (GARCH state).
      resids_prev:  (B, 1) previous residuals (GARCH state).
      params:       (w_gate (1+H, H), b_gate (H,), w_out (H, 3), b_out (3,)),
                    i.e. PyTorch Linear weights already transposed to x@W form.
    Returns:
      (sig2_t (B,1), new_hidden (B,H)).  Caller threads the state:
      sig2_prev <- sig2_t ; resids_prev <- x  (mean_model == 0).
    """
    w_gate, b_gate, w_out, b_out = params
    B = x.shape[0]
    H = h.shape[1]
    assert w_gate.shape == (1 + H, H) and b_gate.shape == (H,)
    assert w_out.shape == (H, 3) and b_out.shape == (3,)

    # Deliberate precision choice: bf16 weights -> native bf16 MXU (full rate);
    # f32 weights -> HIGHEST so recurrent/GARCH state does not drift.
    if precision is None:
        precision = (jax.lax.Precision.HIGHEST
                     if jnp.dtype(w_gate.dtype) == jnp.float32
                     else jax.lax.Precision.DEFAULT)

    # ---- lane density: pad hidden dim to a multiple of 128 (once) ----------
    H_pad = max(128, -(-H // 128) * 128)
    pad_h = H_pad - H

    wgx = w_gate[0:1, :]                       # (1, H)  input row of the gate
    wgh = w_gate[1:, :]                        # (H, H)  hidden -> hidden
    bg = b_gate.reshape(1, H)
    if pad_h:
        wgx = jnp.pad(wgx, ((0, 0), (0, pad_h)))
        wgh = jnp.pad(wgh, ((0, pad_h), (0, pad_h)))       # padded rows/cols = 0
        bg = jnp.pad(bg, ((0, 0), (0, pad_h)))
        w_out_p = jnp.pad(w_out, ((0, pad_h), (0, 0)))      # padded rows = 0
        h_in = jnp.pad(h, ((0, 0), (0, pad_h)))
    else:
        w_out_p = w_out
        h_in = h
    bout = b_out.reshape(1, 3)

    # Hoisted AdjSoftplus constant: basic/denom == softplus(beta*x) * scale.
    scale = 1.0 / math.log(1.0 + math.exp(beta) - math.log(2.0) / beta)

    # Pack the three lane-width-1 state streams into one (B, 3) input.
    states = jnp.concatenate([x, sig2_prev.astype(x.dtype),
                              resids_prev.astype(x.dtype)], axis=1)

    # ---- batch tiling from an explicit VMEM budget --------------------------
    itemsize_h = jnp.dtype(h.dtype).itemsize
    itemsize_s = jnp.dtype(states.dtype).itemsize
    itemsize_w = jnp.dtype(w_gate.dtype).itemsize
    try:
        vmem_cap = int(pltpu.get_tpu_info().vmem_capacity_bytes)
    except Exception:
        vmem_cap = 64 * 1024 * 1024          # v7x-safe fallback
    budget = int(vmem_cap * 0.55)

    weight_bytes = (H_pad * H_pad + 2 * H_pad + 3 * H_pad + 3) * itemsize_w
    per_row = (2 * H_pad * itemsize_h        # h input   (double-buffered)
               + 2 * H_pad * itemsize_h      # h_new out (double-buffered)
               + 2 * 3 * itemsize_s          # packed state input
               + 2 * itemsize_s              # sig2 output
               + 4 * H_pad * 4)              # f32 gate/softplus/h_new temporaries
    tile_cap = max(8, (budget - weight_bytes) // max(per_row, 1))

    tile_b = min(B, max_batch_tile, tile_cap)
    if B >= 16:
        # Give both v7x TensorCores work: at least 2 "parallel" grid steps.
        half = (((B + 1) // 2) + 7) // 8 * 8
        tile_b = min(tile_b, half)
    if tile_b < B:
        tile_b = max(8, (tile_b // 8) * 8)
    if tile_b >= 512:
        row_chunk = 256
        tile_b = (tile_b // row_chunk) * row_chunk
    else:
        row_chunk = tile_b

    grid = (pl.cdiv(B, tile_b),)
    est_bytes = weight_bytes + tile_b * per_row
    vmem_limit = int(min(0.75 * vmem_cap, max(32 << 20, est_bytes + (4 << 20))))

    def row_spec(width):
        return pl.BlockSpec((tile_b, width), lambda i: (i, 0))

    # Whole-array VMEM residents: single copy, no per-step DMA / double buffer.
    vmem_whole = pl.BlockSpec(memory_space=pltpu.MemorySpace.VMEM)

    kernel = functools.partial(_sigma_cell_kernel, beta=float(beta),
                               scale=float(scale), row_chunk=int(row_chunk),
                               precision=precision)

    sig2_t, h_new_pad = pl.pallas_call(
        kernel,
        out_shape=(jax.ShapeDtypeStruct((B, 1), x.dtype),
                   jax.ShapeDtypeStruct((B, H_pad), h.dtype)),
        grid_spec=pltpu.PrefetchScalarGridSpec(
            num_scalar_prefetch=0,
            grid=grid,
            in_specs=[row_spec(3),       # packed [x, sig2_prev, resids_prev]
                      row_spec(H_pad),   # hidden state
                      vmem_whole,        # wgx   (1, Hp)
                      vmem_whole,        # wgh   (Hp, Hp)
                      vmem_whole,        # bg    (1, Hp)
                      vmem_whole,        # w_out (Hp, 3)
                      vmem_whole],       # b_out (1, 3)
            out_specs=(row_spec(1), row_spec(H_pad))),
        compiler_params=pltpu.CompilerParams(
            dimension_semantics=("parallel",),
            vmem_limit_bytes=vmem_limit),
    )(states, h_in, wgx, wgh, bg, w_out_p, bout)

    # A recurrent driver should keep the padded layout across steps; only
    # slice back at the boundary of the cell API.
    h_new = h_new_pad[:, :H] if pad_h else h_new_pad
    return sig2_t, h_new


def _reference(x, h, sig2_prev, resids_prev, params, beta=1.0,
               precision=jax.lax.Precision.HIGHEST):
    """Pure-JAX reference mirroring the PyTorch SIGMACell forward."""
    w_gate, b_gate, w_out, b_out = params
    conc = jnp.concatenate([x, h], axis=1)
    gate = jnp.dot(conc, w_gate, precision=precision) + b_gate
    beta_t = jnp.full_like(gate, beta)
    basic = 1.0 / beta_t * jnp.log(1.0 + jnp.exp(beta_t * gate))
    denom = 1.0 / beta_t * jnp.log(
        1.0 + jnp.exp(beta_t) - jnp.log(jnp.full_like(gate, 2.0)) / beta_t)
    h_new = jnp.maximum(jnp.zeros_like(gate), basic / denom)
    out3 = jnp.maximum(jnp.dot(h_new, w_out, precision=precision) + b_out, 0.0)
    alpha, beta_g, const = out3[:, 0:1], out3[:, 1:2], out3[:, 2:3]
    sig2_t = sig2_prev * alpha + resids_prev ** 2 * beta_g + const
    return sig2_t, h_new


def _run_check(B, H, key):
    ks = jax.random.split(key, 8)
    x = jax.random.normal(ks[0], (B, 1), dtype=jnp.float32)
    h = jax.random.normal(ks[1], (B, H), dtype=jnp.float32)
    sig2_prev = jax.random.uniform(ks[2], (B, 1), dtype=jnp.float32)
    resids_prev = jax.random.normal(ks[3], (B, 1), dtype=jnp.float32)

    # PyTorch-like Linear init (uniform(-1/sqrt(fan_in), 1/sqrt(fan_in))).
    bg_bound = 1.0 / math.sqrt(1 + H)
    bo_bound = 1.0 / math.sqrt(H)
    w_gate = jax.random.uniform(ks[4], (1 + H, H), jnp.float32, -bg_bound, bg_bound)
    b_gate = jax.random.uniform(ks[5], (H,), jnp.float32, -bg_bound, bg_bound)
    w_out = jax.random.uniform(ks[6], (H, 3), jnp.float32, -bo_bound, bo_bound)
    b_out = jax.random.uniform(ks[7], (3,), jnp.float32, -bo_bound, bo_bound)
    params = (w_gate, b_gate, w_out, b_out)

    sig2_t, h_new = sigma_cell_forward(x, h, sig2_prev, resids_prev, params, beta=1.0)
    sig2_t, h_new = jax.block_until_ready((sig2_t, h_new))

    ref_sig2, ref_h = _reference(x, h, sig2_prev, resids_prev, params, beta=1.0)
    assert sig2_t.shape == (B, 1) and h_new.shape == (B, H)
    assert sig2_t.dtype == x.dtype and h_new.dtype == h.dtype
    assert jnp.allclose(h_new, ref_h, atol=1e-4, rtol=1e-4), "hidden mismatch"
    assert jnp.allclose(sig2_t, ref_sig2, atol=1e-4, rtol=1e-4), "sig2 mismatch"


if __name__ == "__main__":
    key = jax.random.PRNGKey(0)
    k1, k2 = jax.random.split(key)
    # Small shape consistent with the module (hidden_size=32, input feature 1).
    _run_check(B=8, H=32, key=k1)
    # Exercises batch tiling (grid of 2 for both TensorCores) + ragged last block.
    _run_check(B=20, H=32, key=k2)
    # Next-step state (mirrors the PyTorch module's internal update):
    #   sig2_prev <- sig2_t ; resids_prev <- x - mean_model(x) == x
    print("KERNEL_OK")
</pallas_src>

<mosaic_0001>
module attributes {stable_mosaic.version = 11 : i64} {
  func.func @_sigma_cell_kernel(%arg0: i32, %arg1: memref<8x3xf32, #tpu.memory_space<vmem>>, %arg2: memref<8x128xf32, #tpu.memory_space<vmem>>, %arg3: memref<1x128xf32, #tpu.memory_space<vmem>>, %arg4: memref<128x128xf32, #tpu.memory_space<vmem>>, %arg5: memref<1x128xf32, #tpu.memory_space<vmem>>, %arg6: memref<128x3xf32, #tpu.memory_space<vmem>>, %arg7: memref<1x3xf32, #tpu.memory_space<vmem>>, %arg8: memref<8x1xf32, #tpu.memory_space<vmem>>, %arg9: memref<8x128xf32, #tpu.memory_space<vmem>>) attributes {dimension_semantics = [#tpu.dimension_semantics<parallel>], iteration_bounds = array<i64: 1>, scalar_prefetch = 0 : i64, scratch_operands = 0 : i64, tpu.core_type = #tpu.core_type<tc>, window_params = [{transform_indices = @transform_0, window_bounds = array<i64: 8, 3>}, {transform_indices = @transform_1, window_bounds = array<i64: 8, 128>}, {pipeline_mode = #tpu.pipeline_mode<synchronous>, transform_indices = @transform_2, window_bounds = array<i64: 1, 128>}, {pipeline_mode = #tpu.pipeline_mode<synchronous>, transform_indices = @transform_3, window_bounds = array<i64: 128, 128>}, {pipeline_mode = #tpu.pipeline_mode<synchronous>, transform_indices = @transform_4, window_bounds = array<i64: 1, 128>}, {pipeline_mode = #tpu.pipeline_mode<synchronous>, transform_indices = @transform_5, window_bounds = array<i64: 128, 3>}, {pipeline_mode = #tpu.pipeline_mode<synchronous>, transform_indices = @transform_6, window_bounds = array<i64: 1, 3>}, {transform_indices = @transform_7, window_bounds = array<i64: 8, 1>}, {transform_indices = @transform_8, window_bounds = array<i64: 8, 128>}]} {
    %c0 = arith.constant 0 : index
    %c0_0 = arith.constant 0 : index
    %0 = vector.load %arg4[%c0, %c0_0] : memref<128x128xf32, #tpu.memory_space<vmem>>, vector<128x128xf32>
    %c0_1 = arith.constant 0 : index
    %c0_2 = arith.constant 0 : index
    %1 = vector.load %arg6[%c0_1, %c0_2] : memref<128x3xf32, #tpu.memory_space<vmem>>, vector<128x3xf32>
    %c0_3 = arith.constant 0 : index
    %c0_4 = arith.constant 0 : index
    %2 = vector.load %arg3[%c0_3, %c0_4] : memref<1x128xf32, #tpu.memory_space<vmem>>, vector<1x128xf32>
    %c0_5 = arith.constant 0 : index
    %c0_6 = arith.constant 0 : index
    %3 = vector.load %arg5[%c0_5, %c0_6] : memref<1x128xf32, #tpu.memory_space<vmem>>, vector<1x128xf32>
    %c0_7 = arith.constant 0 : index
    %c0_8 = arith.constant 0 : index
    %4 = vector.load %arg7[%c0_7, %c0_8] : memref<1x3xf32, #tpu.memory_space<vmem>>, vector<1x3xf32>
    %c0_9 = arith.constant 0 : index
    %c0_10 = arith.constant 0 : index
    %5 = vector.load %arg1[%c0_9, %c0_10] : memref<8x3xf32, #tpu.memory_space<vmem>>, vector<8x3xf32>
    %6 = vector.extract_strided_slice %5 {offsets = [0, 0], sizes = [8, 1], strides = [1, 1]} : vector<8x3xf32> to vector<8x1xf32>
    %7 = vector.extract_strided_slice %5 {offsets = [0, 1], sizes = [8, 1], strides = [1, 1]} : vector<8x3xf32> to vector<8x1xf32>
    %8 = vector.extract_strided_slice %5 {offsets = [0, 2], sizes = [8, 1], strides = [1, 1]} : vector<8x3xf32> to vector<8x1xf32>
    %c0_11 = arith.constant 0 : index
    %c0_12 = arith.constant 0 : index
    %9 = vector.load %arg2[%c0_11, %c0_12] : memref<8x128xf32, #tpu.memory_space<vmem>>, vector<8x128xf32>
    %cst = arith.constant dense<0.000000e+00> : vector<8x128xf32>
    %10 = tpu.matmul %9, %0, %cst {dimension_numbers = #tpu.dot_dimension_numbers<[1], [0], [0], [1], [0, 0, 1, 1], [], []>, precision = #tpu.contract_precision<fp32>} : vector<8x128xf32>, vector<128x128xf32>, vector<8x128xf32> -> vector<8x128xf32>
    %11 = vector.broadcast %6 : vector<8x1xf32> to vector<8x128xf32>
    %12 = vector.broadcast %2 : vector<1x128xf32> to vector<8x128xf32>
    %13 = arith.mulf %11, %12 : vector<8x128xf32>
    %14 = arith.addf %10, %13 : vector<8x128xf32>
    %15 = vector.broadcast %3 : vector<1x128xf32> to vector<8x128xf32>
    %16 = arith.addf %14, %15 : vector<8x128xf32>
    %cst_13 = arith.constant 1.000000e+00 : f32
    %17 = vector.broadcast %cst_13 : f32 to vector<8x128xf32>
    %18 = arith.mulf %17, %16 : vector<8x128xf32>
    %cst_14 = arith.constant 0.000000e+00 : f32
    %19 = vector.broadcast %cst_14 : f32 to vector<8x128xf32>
    %20 = arith.maximumf %18, %19 : vector<8x128xf32>
    %21 = math.absf %18 : vector<8x128xf32>
    %cst_15 = arith.constant 0.000000e+00 : f32
    %22 = vector.broadcast %cst_15 : f32 to vector<8x128xf32>
    %23 = arith.subf %22, %21 : vector<8x128xf32>
    %24 = math.exp %23 : vector<8x128xf32>
    %cst_16 = arith.constant 1.000000e+00 : f32
    %25 = vector.broadcast %cst_16 : f32 to vector<8x128xf32>
    %26 = arith.addf %25, %24 : vector<8x128xf32>
    %27 = math.log %26 : vector<8x128xf32>
    %28 = arith.addf %20, %27 : vector<8x128xf32>
    %cst_17 = arith.constant 0.903378605 : f32
    %29 = vector.broadcast %cst_17 : f32 to vector<8x128xf32>
    %30 = arith.mulf %28, %29 : vector<8x128xf32>
    %cst_18 = arith.constant dense<0.000000e+00> : vector<8x3xf32>
    %31 = tpu.matmul %30, %1, %cst_18 {dimension_numbers = #tpu.dot_dimension_numbers<[1], [0], [0], [1], [0, 0, 1, 1], [], []>, precision = #tpu.contract_precision<fp32>} : vector<8x128xf32>, vector<128x3xf32>, vector<8x3xf32> -> vector<8x3xf32>
    %32 = vector.broadcast %4 : vector<1x3xf32> to vector<8x3xf32>
    %33 = arith.addf %31, %32 : vector<8x3xf32>
    %cst_19 = arith.constant 0.000000e+00 : f32
    %34 = vector.broadcast %cst_19 : f32 to vector<8x3xf32>
    %35 = arith.maximumf %33, %34 : vector<8x3xf32>
    %36 = vector.extract_strided_slice %35 {offsets = [0, 0], sizes = [8, 1], strides = [1, 1]} : vector<8x3xf32> to vector<8x1xf32>
    %37 = vector.extract_strided_slice %35 {offsets = [0, 1], sizes = [8, 1], strides = [1, 1]} : vector<8x3xf32> to vector<8x1xf32>
    %38 = vector.extract_strided_slice %35 {offsets = [0, 2], sizes = [8, 1], strides = [1, 1]} : vector<8x3xf32> to vector<8x1xf32>
    %39 = arith.mulf %7, %36 : vector<8x1xf32>
    %40 = arith.mulf %8, %8 : vector<8x1xf32>
    %41 = arith.mulf %40, %37 : vector<8x1xf32>
    %42 = arith.addf %39, %41 : vector<8x1xf32>
    %43 = arith.addf %42, %38 : vector<8x1xf32>
    %c0_20 = arith.constant 0 : index
    %c0_21 = arith.constant 0 : index
    %44 = vector.load %arg8[%c0_20, %c0_21] : memref<8x1xf32, #tpu.memory_space<vmem>>, vector<8x1xf32>
    tpu.vector_store %arg8[%c0_20, %c0_21], %43 {strides = array<i32>} : memref<8x1xf32, #tpu.memory_space<vmem>>, vector<8x1xf32>,
    %c0_22 = arith.constant 0 : index
    %c0_23 = arith.constant 0 : index
    %45 = vector.load %arg9[%c0_22, %c0_23] : memref<8x128xf32, #tpu.memory_space<vmem>>, vector<8x128xf32>
    tpu.vector_store %arg9[%c0_22, %c0_23], %30 {strides = array<i32>} : memref<8x128xf32, #tpu.memory_space<vmem>>, vector<8x128xf32>,
    return
  }
  func.func @transform_0(%arg0: i32) -> (i32, i32) {
    %c0_i32 = arith.constant 0 : i32
    %c0_i32_0 = arith.constant 0 : i32
    return %arg0, %c0_i32 : i32, i32
  }
  func.func @transform_1(%arg0: i32) -> (i32, i32) {
    %c0_i32 = arith.constant 0 : i32
    %c0_i32_0 = arith.constant 0 : i32
    return %arg0, %c0_i32 : i32, i32
  }
  func.func @transform_2(%arg0: i32) -> (i32, i32) {
    %c0_i32 = arith.constant 0 : i32
    %c0_i32_0 = arith.constant 0 : i32
    %c0_i32_1 = arith.constant 0 : i32
    return %c0_i32, %c0_i32_0 : i32, i32
  }
  func.func @transform_3(%arg0: i32) -> (i32, i32) {
    %c0_i32 = arith.constant 0 : i32
    %c0_i32_0 = arith.constant 0 : i32
    %c0_i32_1 = arith.constant 0 : i32
    return %c0_i32, %c0_i32_0 : i32, i32
  }
  func.func @transform_4(%arg0: i32) -> (i32, i32) {
    %c0_i32 = arith.constant 0 : i32
    %c0_i32_0 = arith.constant 0 : i32
    %c0_i32_1 = arith.constant 0 : i32
    return %c0_i32, %c0_i32_0 : i32, i32
  }
  func.func @transform_5(%arg0: i32) -> (i32, i32) {
    %c0_i32 = arith.constant 0 : i32
    %c0_i32_0 = arith.constant 0 : i32
    %c0_i32_1 = arith.constant 0 : i32
    return %c0_i32, %c0_i32_0 : i32, i32
  }
  func.func @transform_6(%arg0: i32) -> (i32, i32) {
    %c0_i32 = arith.constant 0 : i32
    %c0_i32_0 = arith.constant 0 : i32
    %c0_i32_1 = arith.constant 0 : i32
    return %c0_i32, %c0_i32_0 : i32, i32
  }
  func.func @transform_7(%arg0: i32) -> (i32, i32) {
    %c0_i32 = arith.constant 0 : i32
    %c0_i32_0 = arith.constant 0 : i32
    return %arg0, %c0_i32 : i32, i32
  }
  func.func @transform_8(%arg0: i32) -> (i32, i32) {
    %c0_i32 = arith.constant 0 : i32
    %c0_i32_0 = arith.constant 0 : i32
    return %arg0, %c0_i32 : i32, i32
  }
}

</mosaic_0001>

<llo_original>
// kernel: tpu_custom_call.1
$region0: #{tpu_custom_call.1}
  #allocation0 [shape = 'u32[]', space=smem, size = 0x4, offset = 0x4, fixed_abs, tag = 'smem constant byte address 0x4 - core index']
  #allocation1 [shape = 'u32[144,128]{1,0:T(1,128)}', space=vmem, size = 0x12000, scoped, tag = 'internal scratch']
  %s0 = inlined_call_operand.vmem [shape: f32[8,3], index: 0, kind: input, shape index: {}]
  %s1 = inlined_call_operand.vmem [shape: f32[8,128], index: 1, kind: input, shape index: {}]
  %s2 = inlined_call_operand.vmem [shape: f32[1,128], index: 2, kind: input, shape index: {}]
  %s3 = inlined_call_operand.vmem [shape: f32[128,128], index: 3, kind: input, shape index: {}]
  %s4 = inlined_call_operand.vmem [shape: f32[1,128], index: 4, kind: input, shape index: {}]
  %s5 = inlined_call_operand.vmem [shape: f32[128,3], index: 5, kind: input, shape index: {}]
  %s6 = inlined_call_operand.vmem [shape: f32[1,3], index: 6, kind: input, shape index: {}]
  %s7 = inlined_call_operand.vmem [shape: f32[8,1], index: 7, kind: output, shape index: {0}]
  %s8 = inlined_call_operand.hbm [shape: f32[8,128], index: 8, kind: output, shape index: {1}]
  %9 = xla_tuple %s7, %s8
  %s10 = sld [smem:[#allocation0]]
  $region46: #{tpu_custom_call.1} parent=0
    _
  %s12 = ssub.s32 1, %s10
  %s13 = scalar_select 0, %s12, %s10
  $region1: #{tpu_custom_call.1} parent=0
    #allocation2 [shape = 'u8[4096]{0}', space=vmem, size = 0x1000, scoped, tag = 'output window, operand 1, single buffered']
    #allocation3 [shape = 's32[1]{0}', space=sflag, size = 0x4, scoped, tag = 'scoped memory for tpu_custom_call.1']
    %14 = vsyncpa [#allocation3], 0
    // Predicated region
    $region2: #{tpu_custom_call.1} parent=1 // pred_check
      _
    $region3: #{tpu_custom_call.1} parent=1 // pred_check_branch
      %16 = sbr.rel (0) target = $region5
    $region4: #{tpu_custom_call.1} parent=1 // pred_region
      _
    $region5: #{tpu_custom_call.1} parent=1 // pred_fallthru
      _
    // Predicated region
    $region6: #{tpu_custom_call.1} parent=1 // pred_check
      _
    $region7: #{tpu_custom_call.1} parent=1 // pred_check_branch
      %18 = sbr.rel (0) target = $region9
    $region8: #{tpu_custom_call.1} parent=1 // pred_region
      _
    $region9: #{tpu_custom_call.1} parent=1 // pred_fallthru
      _
    // Predicated region
    $region10: #{tpu_custom_call.1} parent=1 // pred_check
      _
    $region11: #{tpu_custom_call.1} parent=1 // pred_check_branch
      %20 = sbr.rel (0) target = $region13
    $region12: #{tpu_custom_call.1} parent=1 // pred_region
      _
    $region13: #{tpu_custom_call.1} parent=1 // pred_fallthru
      _
    // Predicated region
    $region14: #{tpu_custom_call.1} parent=1 // pred_check
      _
    $region15: #{tpu_custom_call.1} parent=1 // pred_check_branch
      %22 = sbr.rel (0) target = $region17
    $region16: #{tpu_custom_call.1} parent=1 // pred_region
      _
    $region17: #{tpu_custom_call.1} parent=1 // pred_fallthru
      _
    // Predicated region
    $region18: #{tpu_custom_call.1} parent=1 // pred_check
      _
    $region19: #{tpu_custom_call.1} parent=1 // pred_check_branch
      %24 = sbr.rel (0) target = $region21
    $region20: #{tpu_custom_call.1} parent=1 // pred_region
      _
    $region21: #{tpu_custom_call.1} parent=1 // pred_fallthru
      _
    // Predicated region
    $region22: #{tpu_custom_call.1} parent=1 // pred_check
      _
    $region23: #{tpu_custom_call.1} parent=1 // pred_check_branch
      %26 = sbr.rel (0) target = $region25
    $region24: #{tpu_custom_call.1} parent=1 // pred_region
      _
    $region25: #{tpu_custom_call.1} parent=1 // pred_fallthru
      _
    // Predicated region
    $region26: #{tpu_custom_call.1} parent=1 // pred_check
      _
    $region27: #{tpu_custom_call.1} parent=1 // pred_check_branch
      %28 = sbr.rel (0) target = $region29
    $region28: #{tpu_custom_call.1} parent=1 // pred_region
      _
    $region29: #{tpu_custom_call.1} parent=1 // pred_fallthru
      _
    %v29 = vld [vmem:[%s3] sm:$0xff]
    %v30 = vld [vmem:[%s3 + $0x8] sm:$0xff]
    %v31 = vld [vmem:[%s3 + $0x10] sm:$0xff]
    %v32 = vld [vmem:[%s3 + $0x18] sm:$0xff]
    %v33 = vld [vmem:[%s3 + $0x20] sm:$0xff]
    %v34 = vld [vmem:[%s3 + $0x28] sm:$0xff]
    %v35 = vld [vmem:[%s3 + $0x30] sm:$0xff]
    %v36 = vld [vmem:[%s3 + $0x38] sm:$0xff]
    %v37 = vld [vmem:[%s3 + $0x40] sm:$0xff]
    %v38 = vld [vmem:[%s3 + $0x48] sm:$0xff]
    %v39 = vld [vmem:[%s3 + $0x50] sm:$0xff]
    %v40 = vld [vmem:[%s3 + $0x58] sm:$0xff]
    %v41 = vld [vmem:[%s3 + $0x60] sm:$0xff]
    %v42 = vld [vmem:[%s3 + $0x68] sm:$0xff]
    %v43 = vld [vmem:[%s3 + $0x70] sm:$0xff]
    %v44 = vld [vmem:[%s3 + $0x78] sm:$0xff]
    %v45 = vld [vmem:[%s5] sm:$0xff]
    %v46 = vld [vmem:[%s5 + $0x8] sm:$0xff]
    %v47 = vld [vmem:[%s5 + $0x10] sm:$0xff]
    %v48 = vld [vmem:[%s5 + $0x18] sm:$0xff]
    %v49 = vld [vmem:[%s5 + $0x20] sm:$0xff]
    %v50 = vld [vmem:[%s5 + $0x28] sm:$0xff]
    %v51 = vld [vmem:[%s5 + $0x30] sm:$0xff]
    %v52 = vld [vmem:[%s5 + $0x38] sm:$0xff]
    %v53 = vld [vmem:[%s5 + $0x40] sm:$0xff]
    %v54 = vld [vmem:[%s5 + $0x48] sm:$0xff]
    %v55 = vld [vmem:[%s5 + $0x50] sm:$0xff]
    %v56 = vld [vmem:[%s5 + $0x58] sm:$0xff]
    %v57 = vld [vmem:[%s5 + $0x60] sm:$0xff]
    %v58 = vld [vmem:[%s5 + $0x68] sm:$0xff]
    %v59 = vld [vmem:[%s5 + $0x70] sm:$0xff]
    %v60 = vld [vmem:[%s5 + $0x78] sm:$0xff]
    %v61 = vld [vmem:[%s2] sm:$0x1]
    %v62 = vld [vmem:[%s4] sm:$0x1]
    %v63 = vld [vmem:[%s6] sm:$0x1]
    %v64 = vld [vmem:[%s0] sm:$0xff]
    %v65 = vld [vmem:[%s1] sm:$0xff]
    %67 = vset.pattern.permute.xlu0 0
    %68 = vperm.xlu0 %67, %v64
    %v69 = vpop.permute.xlu0 %68
    %v72 = vlaneseq
    %v73 = vshrl.u32 %v72, 7
    %v74 = vsub.s32 0, %v73
    %v75 = vrot.slane %v61, %v74
    %v77 = vmul.f32 %v69, %v75
    %78 = vmatprep.subr.mxu0 0.0
    %v79 = vand.u32 %v29, 4294901760
    %80 = vmatpush1.msra.mxu0 %v79
    %81 = vmatprep.subr.mxu0 0.0
    %v82 = vand.u32 %v30, 4294901760
    %83 = vmatpush1.msra.mxu0 %v82
    %84 = vmatprep.subr.mxu0 0.0
    %v85 = vand.u32 %v31, 4294901760
    %86 = vmatpush1.msra.mxu0 %v85
    %87 = vmatprep.subr.mxu0 0.0
    %v88 = vand.u32 %v32, 4294901760
    %89 = vmatpush1.msra.mxu0 %v88
    %90 = vmatprep.subr.mxu0 0.0
    %v91 = vand.u32 %v33, 4294901760
    %92 = vmatpush1.msra.mxu0 %v91
    %93 = vmatprep.subr.mxu0 0.0
    %v94 = vand.u32 %v34, 4294901760
    %95 = vmatpush1.msra.mxu0 %v94
    %96 = vmatprep.subr.mxu0 0.0
    %v97 = vand.u32 %v35, 4294901760
    %98 = vmatpush1.msra.mxu0 %v97
    %99 = vmatprep.subr.mxu0 0.0
    %v100 = vand.u32 %v36, 4294901760
    %101 = vmatpush1.msra.mxu0 %v100
    %102 = vmatprep.subr.mxu0 0.0
    %v103 = vand.u32 %v37, 4294901760
    %104 = vmatpush1.msra.mxu0 %v103
    %105 = vmatprep.subr.mxu0 0.0
    %v106 = vand.u32 %v38, 4294901760
    %107 = vmatpush1.msra.mxu0 %v106
    %108 = vmatprep.subr.mxu0 0.0
    %v109 = vand.u32 %v39, 4294901760
    %110 = vmatpush1.msra.mxu0 %v109
    %111 = vmatprep.subr.mxu0 0.0
    %v112 = vand.u32 %v40, 4294901760
    %113 = vmatpush1.msra.mxu0 %v112
    %114 = vmatprep.subr.mxu0 0.0
    %v115 = vand.u32 %v41, 4294901760
    %116 = vmatpush1.msra.mxu0 %v115
    %117 = vmatprep.subr.mxu0 0.0
    %v118 = vand.u32 %v42, 4294901760
    %119 = vmatpush1.msra.mxu0 %v118
    %120 = vmatprep.subr.mxu0 0.0
    %v121 = vand.u32 %v43, 4294901760
    %122 = vmatpush1.msra.mxu0 %v121
    %123 = vmatprep.subr.mxu0 0.0
    %v124 = vand.u32 %v44, 4294901760
    %125 = vmatpush1.msra.mxu0 %v124
    %126 = vmatprep.subr.mxu0 0.0
    %127 = vmatpush1.msra.mxu0 0.0
    %128 = vmatprep.subr.mxu0 0.0
    %129 = vmatpush1.msra.mxu0 0.0
    %130 = vmatprep.subr.mxu0 0.0
    %131 = vmatpush1.msra.mxu0 0.0
    %132 = vmatprep.subr.mxu0 0.0
    %133 = vmatpush1.msra.mxu0 0.0
    %134 = vmatprep.subr.mxu0 0.0
    %135 = vmatpush1.msra.mxu0 0.0
    %136 = vmatprep.subr.mxu0 0.0
    %137 = vmatpush1.msra.mxu0 0.0
    %138 = vmatprep.subr.mxu0 0.0
    %139 = vmatpush1.msra.mxu0 0.0
    %140 = vmatprep.subr.mxu0 0.0
    %141 = vmatpush1.msra.mxu0 0.0
    %142 = vmatprep.subr.mxu0 0.0
    %143 = vmatpush1.msra.mxu0 0.0
    %144 = vmatprep.subr.mxu0 0.0
    %145 = vmatpush1.msra.mxu0 0.0
    %146 = vmatprep.subr.mxu0 0.0
    %147 = vmatpush1.msra.mxu0 0.0
    %148 = vmatprep.subr.mxu0 0.0
    %149 = vmatpush1.msra.mxu0 0.0
    %150 = vmatprep.subr.mxu0 0.0
    %151 = vmatpush1.msra.mxu0 0.0
    %152 = vmatprep.subr.mxu0 0.0
    %153 = vmatpush1.msra.mxu0 0.0
    %154 = vmatprep.subr.mxu0 0.0
    %155 = vmatpush1.msra.mxu0 0.0
    %156 = vmatprep.subr.mxu0 0.0
    %157 = vmatpush1.msra.mxu0 0.0
    %158 = vmatprep.mubr.f32.mxu0 0.0
    %v159 = vand.u32 %v65, 4294901760
    %v160 = vsub.f32 %v65, %v159
    %v161 = vand.u32 %v160, 4294901760
    %v162 = vsub.f32 %v160, %v161
    %v163 = vand.u32 %v162, 4294901760
    %164 = vmatmul.mubr.f32.gmra.mrb[0].mxu0 %v163
    %v165 = vpop.f32.mrb[0].mxu0
    %v166 = vadd.f32 %v77, %v165
    %v167 = vpop.f32.mrb[0].mxu0
    %168 = vdwg.mxu0
    %169 = vmatprep.subr.mxu0 0.0
    %v170 = vand.u32 %v29, 4294901760
    %v171 = vsub.f32 %v29, %v170
    %v172 = vand.u32 %v171, 4294901760
    %v173 = vsub.f32 %v171, %v172
    %v174 = vand.u32 %v173, 4294901760
    %175 = vmatpush1.msra.mxu0 %v174
    %176 = vmatprep.subr.mxu0 0.0
    %v177 = vand.u32 %v30, 4294901760
    %v178 = vsub.f32 %v30, %v177
    %v179 = vand.u32 %v178, 4294901760
    %v180 = vsub.f32 %v178, %v179
    %v181 = vand.u32 %v180, 4294901760
    %182 = vmatpush1.msra.mxu0 %v181
    %183 = vmatprep.subr.mxu0 0.0
    %v184 = vand.u32 %v31, 4294901760
    %v185 = vsub.f32 %v31, %v184
    %v186 = vand.u32 %v185, 4294901760
    %v187 = vsub.f32 %v185, %v186
    %v188 = vand.u32 %v187, 4294901760
    %189 = vmatpush1.msra.mxu0 %v188
    %190 = vmatprep.subr.mxu0 0.0
    %v191 = vand.u32 %v32, 4294901760
    %v192 = vsub.f32 %v32, %v191
    %v193 = vand.u32 %v192, 4294901760
    %v194 = vsub.f32 %v192, %v193
    %v195 = vand.u32 %v194, 4294901760
    %196 = vmatpush1.msra.mxu0 %v195
    %197 = vmatprep.subr.mxu0 0.0
    %v198 = vand.u32 %v33, 4294901760
    %v199 = vsub.f32 %v33, %v198
    %v200 = vand.u32 %v199, 4294901760
    %v201 = vsub.f32 %v199, %v200
    %v202 = vand.u32 %v201, 4294901760
    %203 = vmatpush1.msra.mxu0 %v202
    %204 = vmatprep.subr.mxu0 0.0
    %v205 = vand.u32 %v34, 4294901760
    %v206 = vsub.f32 %v34, %v205
    %v207 = vand.u32 %v206, 4294901760
    %v208 = vsub.f32 %v206, %v207
    %v209 = vand.u32 %v208, 4294901760
    %210 = vmatpush1.msra.mxu0 %v209
    %211 = vmatprep.subr.mxu0 0.0
    %v212 = vand.u32 %v35, 4294901760
    %v213 = vsub.f32 %v35, %v212
    %v214 = vand.u32 %v213, 4294901760
    %v215 = vsub.f32 %v213, %v214
    %v216 = vand.u32 %v215, 4294901760
    %217 = vmatpush1.msra.mxu0 %v216
    %218 = vmatprep.subr.mxu0 0.0
    %v219 = vand.u32 %v36, 4294901760
    %v220 = vsub.f32 %v36, %v219
    %v221 = vand.u32 %v220, 4294901760
    %v222 = vsub.f32 %v220, %v221
    %v223 = vand.u32 %v222, 4294901760
    %224 = vmatpush1.msra.mxu0 %v223
    %225 = vmatprep.subr.mxu0 0.0
    %v226 = vand.u32 %v37, 4294901760
    %v227 = vsub.f32 %v37, %v226
    %v228 = vand.u32 %v227, 4294901760
    %v229 = vsub.f32 %v227, %v228
    %v230 = vand.u32 %v229, 4294901760
    %231 = vmatpush1.msra.mxu0 %v230
    %232 = vmatprep.subr.mxu0 0.0
    %v233 = vand.u32 %v38, 4294901760
    %v234 = vsub.f32 %v38, %v233
    %v235 = vand.u32 %v234, 4294901760
    %v236 = vsub.f32 %v234, %v235
    %v237 = vand.u32 %v236, 4294901760
    %238 = vmatpush1.msra.mxu0 %v237
    %239 = vmatprep.subr.mxu0 0.0
    %v240 = vand.u32 %v39, 4294901760
    %v241 = vsub.f32 %v39, %v240
    %v242 = vand.u32 %v241, 4294901760
    %v243 = vsub.f32 %v241, %v242
    %v244 = vand.u32 %v243, 4294901760
    %245 = vmatpush1.msra.mxu0 %v244
    %246 = vmatprep.subr.mxu0 0.0
    %v247 = vand.u32 %v40, 4294901760
    %v248 = vsub.f32 %v40, %v247
    %v249 = vand.u32 %v248, 4294901760
    %v250 = vsub.f32 %v248, %v249
    %v251 = vand.u32 %v250, 4294901760
    %252 = vmatpush1.msra.mxu0 %v251
    %253 = vmatprep.subr.mxu0 0.0
    %v254 = vand.u32 %v41, 4294901760
    %v255 = vsub.f32 %v41, %v254
    %v256 = vand.u32 %v255, 4294901760
    %v257 = vsub.f32 %v255, %v256
    %v258 = vand.u32 %v257, 4294901760
    %259 = vmatpush1.msra.mxu0 %v258
    %260 = vmatprep.subr.mxu0 0.0
    %v261 = vand.u32 %v42, 4294901760
    %v262 = vsub.f32 %v42, %v261
    %v263 = vand.u32 %v262, 4294901760
    %v264 = vsub.f32 %v262, %v263
    %v265 = vand.u32 %v264, 4294901760
    %266 = vmatpush1.msra.mxu0 %v265
    %267 = vmatprep.subr.mxu0 0.0
    %v268 = vand.u32 %v43, 4294901760
    %v269 = vsub.f32 %v43, %v268
    %v270 = vand.u32 %v269, 4294901760
    %v271 = vsub.f32 %v269, %v270
    %v272 = vand.u32 %v271, 4294901760
    %273 = vmatpush1.msra.mxu0 %v272
    %274 = vmatprep.subr.mxu0 0.0
    %v275 = vand.u32 %v44, 4294901760
    %v276 = vsub.f32 %v44, %v275
    %v277 = vand.u32 %v276, 4294901760
    %v278 = vsub.f32 %v276, %v277
    %v279 = vand.u32 %v278, 4294901760
    %280 = vmatpush1.msra.mxu0 %v279
    %281 = vmatprep.subr.mxu0 0.0
    %282 = vmatpush1.msra.mxu0 0.0
    %283 = vmatprep.subr.mxu0 0.0
    %284 = vmatpush1.msra.mxu0 0.0
    %285 = vmatprep.subr.mxu0 0.0
    %286 = vmatpush1.msra.mxu0 0.0
    %287 = vmatprep.subr.mxu0 0.0
    %288 = vmatpush1.msra.mxu0 0.0
    %289 = vmatprep.subr.mxu0 0.0
    %290 = vmatpush1.msra.mxu0 0.0
    %291 = vmatprep.subr.mxu0 0.0
    %292 = vmatpush1.msra.mxu0 0.0
    %293 = vmatprep.subr.mxu0 0.0
    %294 = vmatpush1.msra.mxu0 0.0
    %295 = vmatprep.subr.mxu0 0.0
    %296 = vmatpush1.msra.mxu0 0.0
    %297 = vmatprep.subr.mxu0 0.0
    %298 = vmatpush1.msra.mxu0 0.0
    %299 = vmatprep.subr.mxu0 0.0
    %300 = vmatpush1.msra.mxu0 0.0
    %301 = vmatprep.subr.mxu0 0.0
    %302 = vmatpush1.msra.mxu0 0.0
    %303 = vmatprep.subr.mxu0 0.0
    %304 = vmatpush1.msra.mxu0 0.0
    %305 = vmatprep.subr.mxu0 0.0
    %306 = vmatpush1.msra.mxu0 0.0
    %307 = vmatprep.subr.mxu0 0.0
    %308 = vmatpush1.msra.mxu0 0.0
    %309 = vmatprep.subr.mxu0 0.0
    %310 = vmatpush1.msra.mxu0 0.0
    %311 = vmatprep.subr.mxu0 0.0
    %312 = vmatpush1.msra.mxu0 0.0
    %313 = vmatprep.mubr.f32.mxu0 0.0
    %v314 = vand.u32 %v65, 4294901760
    %315 = vmatmul.mubr.f32.gmra.mrb[0].mxu0 %v314
    %v316 = vpop.f32.mrb[0].mxu0
    %v317 = vadd.f32 %v166, %v316
    %v318 = vpop.f32.mrb[0].mxu0
    %319 = vdwg.mxu0
    %320 = vmatprep.subr.mxu0 0.0
    %v321 = vand.u32 %v29, 4294901760
    %v322 = vsub.f32 %v29, %v321
    %323 = vmatpush1.msra.mxu0 %v322
    %324 = vmatprep.subr.mxu0 0.0
    %v325 = vand.u32 %v30, 4294901760
    %v326 = vsub.f32 %v30, %v325
    %327 = vmatpush1.msra.mxu0 %v326
    %328 = vmatprep.subr.mxu0 0.0
    %v329 = vand.u32 %v31, 4294901760
    %v330 = vsub.f32 %v31, %v329
    %331 = vmatpush1.msra.mxu0 %v330
    %332 = vmatprep.subr.mxu0 0.0
    %v333 = vand.u32 %v32, 4294901760
    %v334 = vsub.f32 %v32, %v333
    %335 = vmatpush1.msra.mxu0 %v334
    %336 = vmatprep.subr.mxu0 0.0
    %v337 = vand.u32 %v33, 4294901760
    %v338 = vsub.f32 %v33, %v337
    %339 = vmatpush1.msra.mxu0 %v338
    %340 = vmatprep.subr.mxu0 0.0
    %v341 = vand.u32 %v34, 4294901760
    %v342 = vsub.f32 %v34, %v341
    %343 = vmatpush1.msra.mxu0 %v342
    %344 = vmatprep.subr.mxu0 0.0
    %v345 = vand.u32 %v35, 4294901760
    %v346 = vsub.f32 %v35, %v345
    %347 = vmatpush1.msra.mxu0 %v346
    %348 = vmatprep.subr.mxu0 0.0
    %v349 = vand.u32 %v36, 4294901760
    %v350 = vsub.f32 %v36, %v349
    %351 = vmatpush1.msra.mxu0 %v350
    %352 = vmatprep.subr.mxu0 0.0
    %v353 = vand.u32 %v37, 4294901760
    %v354 = vsub.f32 %v37, %v353
    %355 = vmatpush1.msra.mxu0 %v354
    %356 = vmatprep.subr.mxu0 0.0
    %v357 = vand.u32 %v38, 4294901760
    %v358 = vsub.f32 %v38, %v357
    %359 = vmatpush1.msra.mxu0 %v358
    %360 = vmatprep.subr.mxu0 0.0
    %v361 = vand.u32 %v39, 4294901760
    %v362 = vsub.f32 %v39, %v361
    %363 = vmatpush1.msra.mxu0 %v362
    %364 = vmatprep.subr.mxu0 0.0
    %v365 = vand.u32 %v40, 4294901760
    %v366 = vsub.f32 %v40, %v365
    %367 = vmatpush1.msra.mxu0 %v366
    %368 = vmatprep.subr.mxu0 0.0
    %v369 = vand.u32 %v41, 4294901760
    %v370 = vsub.f32 %v41, %v369
    %371 = vmatpush1.msra.mxu0 %v370
    %372 = vmatprep.subr.mxu0 0.0
    %v373 = vand.u32 %v42, 4294901760
    %v374 = vsub.f32 %v42, %v373
    %375 = vmatpush1.msra.mxu0 %v374
    %376 = vmatprep.subr.mxu0 0.0
    %v377 = vand.u32 %v43, 4294901760
    %v378 = vsub.f32 %v43, %v377
    %379 = vmatpush1.msra.mxu0 %v378
    %380 = vmatprep.subr.mxu0 0.0
    %v381 = vand.u32 %v44, 4294901760
    %v382 = vsub.f32 %v44, %v381
    %383 = vmatpush1.msra.mxu0 %v382
    %384 = vmatprep.subr.mxu0 0.0
    %385 = vmatpush1.msra.mxu0 0.0
    %386 = vmatprep.subr.mxu0 0.0
    %387 = vmatpush1.msra.mxu0 0.0
    %388 = vmatprep.subr.mxu0 0.0
    %389 = vmatpush1.msra.mxu0 0.0
    %390 = vmatprep.subr.mxu0 0.0
    %391 = vmatpush1.msra.mxu0 0.0
    %392 = vmatprep.subr.mxu0 0.0
    %393 = vmatpush1.msra.mxu0 0.0
    %394 = vmatprep.subr.mxu0 0.0
    %395 = vmatpush1.msra.mxu0 0.0
    %396 = vmatprep.subr.mxu0 0.0
    %397 = vmatpush1.msra.mxu0 0.0
    %398 = vmatprep.subr.mxu0 0.0
    %399 = vmatpush1.msra.mxu0 0.0
    %400 = vmatprep.subr.mxu0 0.0
    %401 = vmatpush1.msra.mxu0 0.0
    %402 = vmatprep.subr.mxu0 0.0
    %403 = vmatpush1.msra.mxu0 0.0
    %404 = vmatprep.subr.mxu0 0.0
    %405 = vmatpush1.msra.mxu0 0.0
    %406 = vmatprep.subr.mxu0 0.0
    %407 = vmatpush1.msra.mxu0 0.0
    %408 = vmatprep.subr.mxu0 0.0
    %409 = vmatpush1.msra.mxu0 0.0
    %410 = vmatprep.subr.mxu0 0.0
    %411 = vmatpush1.msra.mxu0 0.0
    %412 = vmatprep.subr.mxu0 0.0
    %413 = vmatpush1.msra.mxu0 0.0
    %414 = vmatprep.subr.mxu0 0.0
    %415 = vmatpush1.msra.mxu0 0.0
    %416 = vmatprep.mubr.f32.mxu0 0.0
    %v417 = vand.u32 %v65, 4294901760
    %v418 = vsub.f32 %v65, %v417
    %419 = vmatmul.mubr.f32.gmra.mrb[0].mxu0 %v418
    %v420 = vpop.f32.mrb[0].mxu0
    %v421 = vadd.f32 %v317, %v420
    %v422 = vpop.f32.mrb[0].mxu0
    %423 = vdwg.mxu0
    %424 = vmatprep.subr.mxu0 0.0
    %v425 = vand.u32 %v29, 4294901760
    %426 = vmatpush1.msra.mxu0 %v425
    %427 = vmatprep.subr.mxu0 0.0
    %v428 = vand.u32 %v30, 4294901760
    %429 = vmatpush1.msra.mxu0 %v428
    %430 = vmatprep.subr.mxu0 0.0
    %v431 = vand.u32 %v31, 4294901760
    %432 = vmatpush1.msra.mxu0 %v431
    %433 = vmatprep.subr.mxu0 0.0
    %v434 = vand.u32 %v32, 4294901760
    %435 = vmatpush1.msra.mxu0 %v434
    %436 = vmatprep.subr.mxu0 0.0
    %v437 = vand.u32 %v33, 4294901760
    %438 = vmatpush1.msra.mxu0 %v437
    %439 = vmatprep.subr.mxu0 0.0
    %v440 = vand.u32 %v34, 4294901760
    %441 = vmatpush1.msra.mxu0 %v440
    %442 = vmatprep.subr.mxu0 0.0
    %v443 = vand.u32 %v35, 4294901760
    %444 = vmatpush1.msra.mxu0 %v443
    %445 = vmatprep.subr.mxu0 0.0
    %v446 = vand.u32 %v36, 4294901760
    %447 = vmatpush1.msra.mxu0 %v446
    %448 = vmatprep.subr.mxu0 0.0
    %v449 = vand.u32 %v37, 4294901760
    %450 = vmatpush1.msra.mxu0 %v449
    %451 = vmatprep.subr.mxu0 0.0
    %v452 = vand.u32 %v38, 4294901760
    %453 = vmatpush1.msra.mxu0 %v452
    %454 = vmatprep.subr.mxu0 0.0
    %v455 = vand.u32 %v39, 4294901760
    %456 = vmatpush1.msra.mxu0 %v455
    %457 = vmatprep.subr.mxu0 0.0
    %v458 = vand.u32 %v40, 4294901760
    %459 = vmatpush1.msra.mxu0 %v458
    %460 = vmatprep.subr.mxu0 0.0
    %v461 = vand.u32 %v41, 4294901760
    %462 = vmatpush1.msra.mxu0 %v461
    %463 = vmatprep.subr.mxu0 0.0
    %v464 = vand.u32 %v42, 4294901760
    %465 = vmatpush1.msra.mxu0 %v464
    %466 = vmatprep.subr.mxu0 0.0
    %v467 = vand.u32 %v43, 4294901760
    %468 = vmatpush1.msra.mxu0 %v467
    %469 = vmatprep.subr.mxu0 0.0
    %v470 = vand.u32 %v44, 4294901760
    %471 = vmatpush1.msra.mxu0 %v470
    %472 = vmatprep.subr.mxu0 0.0
    %473 = vmatpush1.msra.mxu0 0.0
    %474 = vmatprep.subr.mxu0 0.0
    %475 = vmatpush1.msra.mxu0 0.0
    %476 = vmatprep.subr.mxu0 0.0
    %477 = vmatpush1.msra.mxu0 0.0
    %478 = vmatprep.subr.mxu0 0.0
    %479 = vmatpush1.msra.mxu0 0.0
    %480 = vmatprep.subr.mxu0 0.0
    %481 = vmatpush1.msra.mxu0 0.0
    %482 = vmatprep.subr.mxu0 0.0
    %483 = vmatpush1.msra.mxu0 0.0
    %484 = vmatprep.subr.mxu0 0.0
    %485 = vmatpush1.msra.mxu0 0.0
    %486 = vmatprep.subr.mxu0 0.0
    %487 = vmatpush1.msra.mxu0 0.0
    %488 = vmatprep.subr.mxu0 0.0
    %489 = vmatpush1.msra.mxu0 0.0
    %490 = vmatprep.subr.mxu0 0.0
    %491 = vmatpush1.msra.mxu0 0.0
    %492 = vmatprep.subr.mxu0 0.0
    %493 = vmatpush1.msra.mxu0 0.0
    %494 = vmatprep.subr.mxu0 0.0
    %495 = vmatpush1.msra.mxu0 0.0
    %496 = vmatprep.subr.mxu0 0.0
    %497 = vmatpush1.msra.mxu0 0.0
    %498 = vmatprep.subr.mxu0 0.0
    %499 = vmatpush1.msra.mxu0 0.0
    %500 = vmatprep.subr.mxu0 0.0
    %501 = vmatpush1.msra.mxu0 0.0
    %502 = vmatprep.subr.mxu0 0.0
    %503 = vmatpush1.msra.mxu0 0.0
    %504 = vmatprep.mubr.f32.mxu0 0.0
    %v505 = vand.u32 %v65, 4294901760
    %v506 = vsub.f32 %v65, %v505
    %v507 = vand.u32 %v506, 4294901760
    %508 = vmatmul.mubr.f32.gmra.mrb[0].mxu0 %v507
    %v509 = vpop.f32.mrb[0].mxu0
    %v510 = vadd.f32 %v421, %v509
    %v511 = vpop.f32.mrb[0].mxu0
    %512 = vdwg.mxu0
    %513 = vmatprep.subr.mxu0 0.0
    %v514 = vand.u32 %v29, 4294901760
    %v515 = vsub.f32 %v29, %v514
    %v516 = vand.u32 %v515, 4294901760
    %517 = vmatpush1.msra.mxu0 %v516
    %518 = vmatprep.subr.mxu0 0.0
    %v519 = vand.u32 %v30, 4294901760
    %v520 = vsub.f32 %v30, %v519
    %v521 = vand.u32 %v520, 4294901760
    %522 = vmatpush1.msra.mxu0 %v521
    %523 = vmatprep.subr.mxu0 0.0
    %v524 = vand.u32 %v31, 4294901760
    %v525 = vsub.f32 %v31, %v524
    %v526 = vand.u32 %v525, 4294901760
    %527 = vmatpush1.msra.mxu0 %v526
    %528 = vmatprep.subr.mxu0 0.0
    %v529 = vand.u32 %v32, 4294901760
    %v530 = vsub.f32 %v32, %v529
    %v531 = vand.u32 %v530, 4294901760
    %532 = vmatpush1.msra.mxu0 %v531
    %533 = vmatprep.subr.mxu0 0.0
    %v534 = vand.u32 %v33, 4294901760
    %v535 = vsub.f32 %v33, %v534
    %v536 = vand.u32 %v535, 4294901760
    %537 = vmatpush1.msra.mxu0 %v536
    %538 = vmatprep.subr.mxu0 0.0
    %v539 = vand.u32 %v34, 4294901760
    %v540 = vsub.f32 %v34, %v539
    %v541 = vand.u32 %v540, 4294901760
    %542 = vmatpush1.msra.mxu0 %v541
    %543 = vmatprep.subr.mxu0 0.0
    %v544 = vand.u32 %v35, 4294901760
    %v545 = vsub.f32 %v35, %v544
    %v546 = vand.u32 %v545, 4294901760
    %547 = vmatpush1.msra.mxu0 %v546
    %548 = vmatprep.subr.mxu0 0.0
    %v549 = vand.u32 %v36, 4294901760
    %v550 = vsub.f32 %v36, %v549
    %v551 = vand.u32 %v550, 4294901760
    %552 = vmatpush1.msra.mxu0 %v551
    %553 = vmatprep.subr.mxu0 0.0
    %v554 = vand.u32 %v37, 4294901760
    %v555 = vsub.f32 %v37, %v554
    %v556 = vand.u32 %v555, 4294901760
    %557 = vmatpush1.msra.mxu0 %v556
    %558 = vmatprep.subr.mxu0 0.0
    %v559 = vand.u32 %v38, 4294901760
    %v560 = vsub.f32 %v38, %v559
    %v561 = vand.u32 %v560, 4294901760
    %562 = vmatpush1.msra.mxu0 %v561
    %563 = vmatprep.subr.mxu0 0.0
    %v564 = vand.u32 %v39, 4294901760
    %v565 = vsub.f32 %v39, %v564
    %v566 = vand.u32 %v565, 4294901760
    %567 = vmatpush1.msra.mxu0 %v566
    %568 = vmatprep.subr.mxu0 0.0
    %v569 = vand.u32 %v40, 4294901760
    %v570 = vsub.f32 %v40, %v569
    %v571 = vand.u32 %v570, 4294901760
    %572 = vmatpush1.msra.mxu0 %v571
    %573 = vmatprep.subr.mxu0 0.0
    %v574 = vand.u32 %v41, 4294901760
    %v575 = vsub.f32 %v41, %v574
    %v576 = vand.u32 %v575, 4294901760
    %577 = vmatpush1.msra.mxu0 %v576
    %578 = vmatprep.subr.mxu0 0.0
    %v579 = vand.u32 %v42, 4294901760
    %v580 = vsub.f32 %v42, %v579
    %v581 = vand.u32 %v580, 4294901760
    %582 = vmatpush1.msra.mxu0 %v581
    %583 = vmatprep.subr.mxu0 0.0
    %v584 = vand.u32 %v43, 4294901760
    %v585 = vsub.f32 %v43, %v584
    %v586 = vand.u32 %v585, 4294901760
    %587 = vmatpush1.msra.mxu0 %v586
    %588 = vmatprep.subr.mxu0 0.0
    %v589 = vand.u32 %v44, 4294901760
    %v590 = vsub.f32 %v44, %v589
    %v591 = vand.u32 %v590, 4294901760
    %592 = vmatpush1.msra.mxu0 %v591
    %593 = vmatprep.subr.mxu0 0.0
    %594 = vmatpush1.msra.mxu0 0.0
    %595 = vmatprep.subr.mxu0 0.0
    %596 = vmatpush1.msra.mxu0 0.0
    %597 = vmatprep.subr.mxu0 0.0
    %598 = vmatpush1.msra.mxu0 0.0
    %599 = vmatprep.subr.mxu0 0.0
    %600 = vmatpush1.msra.mxu0 0.0
    %601 = vmatprep.subr.mxu0 0.0
    %602 = vmatpush1.msra.mxu0 0.0
    %603 = vmatprep.subr.mxu0 0.0
    %604 = vmatpush1.msra.mxu0 0.0
    %605 = vmatprep.subr.mxu0 0.0
    %606 = vmatpush1.msra.mxu0 0.0
    %607 = vmatprep.subr.mxu0 0.0
    %608 = vmatpush1.msra.mxu0 0.0
    %609 = vmatprep.subr.mxu0 0.0
    %610 = vmatpush1.msra.mxu0 0.0
    %611 = vmatprep.subr.mxu0 0.0
    %612 = vmatpush1.msra.mxu0 0.0
    %613 = vmatprep.subr.mxu0 0.0
    %614 = vmatpush1.msra.mxu0 0.0
    %615 = vmatprep.subr.mxu0 0.0
    %616 = vmatpush1.msra.mxu0 0.0
    %617 = vmatprep.subr.mxu0 0.0
    %618 = vmatpush1.msra.mxu0 0.0
    %619 = vmatprep.subr.mxu0 0.0
    %620 = vmatpush1.msra.mxu0 0.0
    %621 = vmatprep.subr.mxu0 0.0
    %622 = vmatpush1.msra.mxu0 0.0
    %623 = vmatprep.subr.mxu0 0.0
    %624 = vmatpush1.msra.mxu0 0.0
    %625 = vmatprep.mubr.f32.mxu0 0.0
    %v626 = vand.u32 %v65, 4294901760
    %627 = vmatmul.mubr.f32.gmra.mrb[0].mxu0 %v626
    %v628 = vpop.f32.mrb[0].mxu0
    %v629 = vadd.f32 %v510, %v628
    %v630 = vpop.f32.mrb[0].mxu0
    %631 = vdwg.mxu0
    %632 = vmatprep.subr.mxu0 0.0
    %v633 = vand.u32 %v29, 4294901760
    %634 = vmatpush1.msra.mxu0 %v633
    %635 = vmatprep.subr.mxu0 0.0
    %v636 = vand.u32 %v30, 4294901760
    %637 = vmatpush1.msra.mxu0 %v636
    %638 = vmatprep.subr.mxu0 0.0
    %v639 = vand.u32 %v31, 4294901760
    %640 = vmatpush1.msra.mxu0 %v639
    %641 = vmatprep.subr.mxu0 0.0
    %v642 = vand.u32 %v32, 4294901760
    %643 = vmatpush1.msra.mxu0 %v642
    %644 = vmatprep.subr.mxu0 0.0
    %v645 = vand.u32 %v33, 4294901760
    %646 = vmatpush1.msra.mxu0 %v645
    %647 = vmatprep.subr.mxu0 0.0
    %v648 = vand.u32 %v34, 4294901760
    %649 = vmatpush1.msra.mxu0 %v648
    %650 = vmatprep.subr.mxu0 0.0
    %v651 = vand.u32 %v35, 4294901760
    %652 = vmatpush1.msra.mxu0 %v651
    %653 = vmatprep.subr.mxu0 0.0
    %v654 = vand.u32 %v36, 4294901760
    %655 = vmatpush1.msra.mxu0 %v654
    %656 = vmatprep.subr.mxu0 0.0
    %v657 = vand.u32 %v37, 4294901760
    %658 = vmatpush1.msra.mxu0 %v657
    %659 = vmatprep.subr.mxu0 0.0
    %v660 = vand.u32 %v38, 4294901760
    %661 = vmatpush1.msra.mxu0 %v660
    %662 = vmatprep.subr.mxu0 0.0
    %v663 = vand.u32 %v39, 4294901760
    %664 = vmatpush1.msra.mxu0 %v663
    %665 = vmatprep.subr.mxu0 0.0
    %v666 = vand.u32 %v40, 4294901760
    %667 = vmatpush1.msra.mxu0 %v666
    %668 = vmatprep.subr.mxu0 0.0
    %v669 = vand.u32 %v41, 4294901760
    %670 = vmatpush1.msra.mxu0 %v669
    %671 = vmatprep.subr.mxu0 0.0
    %v672 = vand.u32 %v42, 4294901760
    %673 = vmatpush1.msra.mxu0 %v672
    %674 = vmatprep.subr.mxu0 0.0
    %v675 = vand.u32 %v43, 4294901760
    %676 = vmatpush1.msra.mxu0 %v675
    %677 = vmatprep.subr.mxu0 0.0
    %v678 = vand.u32 %v44, 4294901760
    %679 = vmatpush1.msra.mxu0 %v678
    %680 = vmatprep.subr.mxu0 0.0
    %681 = vmatpush1.msra.mxu0 0.0
    %682 = vmatprep.subr.mxu0 0.0
    %683 = vmatpush1.msra.mxu0 0.0
    %684 = vmatprep.subr.mxu0 0.0
    %685 = vmatpush1.msra.mxu0 0.0
    %686 = vmatprep.subr.mxu0 0.0
    %687 = vmatpush1.msra.mxu0 0.0
    %688 = vmatprep.subr.mxu0 0.0
    %689 = vmatpush1.msra.mxu0 0.0
    %690 = vmatprep.subr.mxu0 0.0
    %691 = vmatpush1.msra.mxu0 0.0
    %692 = vmatprep.subr.mxu0 0.0
    %693 = vmatpush1.msra.mxu0 0.0
    %694 = vmatprep.subr.mxu0 0.0
    %695 = vmatpush1.msra.mxu0 0.0
    %696 = vmatprep.subr.mxu0 0.0
    %697 = vmatpush1.msra.mxu0 0.0
    %698 = vmatprep.subr.mxu0 0.0
    %699 = vmatpush1.msra.mxu0 0.0
    %700 = vmatprep.subr.mxu0 0.0
    %701 = vmatpush1.msra.mxu0 0.0
    %702 = vmatprep.subr.mxu0 0.0
    %703 = vmatpush1.msra.mxu0 0.0
    %704 = vmatprep.subr.mxu0 0.0
    %705 = vmatpush1.msra.mxu0 0.0
    %706 = vmatprep.subr.mxu0 0.0
    %707 = vmatpush1.msra.mxu0 0.0
    %708 = vmatprep.subr.mxu0 0.0
    %709 = vmatpush1.msra.mxu0 0.0
    %710 = vmatprep.subr.mxu0 0.0
    %711 = vmatpush1.msra.mxu0 0.0
    %712 = vmatprep.mubr.f32.mxu0 0.0
    %v713 = vand.u32 %v65, 4294901760
    %714 = vmatmul.mubr.f32.gmra.mrb[0].mxu0 %v713
    %v715 = vpop.f32.mrb[0].mxu0
    %v716 = vadd.f32 %v629, %v715
    %v717 = vpop.f32.mrb[0].mxu0
    %718 = vdwg.mxu0
    %v720 = vlaneseq
    %v721 = vshrl.u32 %v720, 7
    %v722 = vsub.s32 0, %v721
    %v723 = vrot.slane %v62, %v722
    %v725 = vadd.f32 %v716, %v723
    %v726 = vmax.f32 %v725, 0.0
    %v727 = vand.u32 2147483647, %v725
    %v728 = vsub.f32 0.0, %v727
    %v729 = vmul.f32 %v728, 1.442695
    %v730 = vpow.pop %v729
    %v731 = vadd.f32 %v730, 1.0
    %v732 = vlog2.pop %v731
    %v733 = vmul.f32 %v732, 0.6931472
    %v734 = vadd.f32 %v726, %v733
    %v735 = vmul.f32 %v734, 0.9033786
    %v737 = vlaneseq
    %v738 = vshrl.u32 %v737, 7
    %v739 = vsub.s32 0, %v738
    %v740 = vrot.slane %v63, %v739
    %742 = vmatprep.subr.mxu0 0.0
    %v743 = vand.u32 %v45, 4294901760
    %744 = vmatpush1.msra.mxu0 %v743
    %745 = vmatprep.subr.mxu0 0.0
    %v746 = vand.u32 %v46, 4294901760
    %747 = vmatpush1.msra.mxu0 %v746
    %748 = vmatprep.subr.mxu0 0.0
    %v749 = vand.u32 %v47, 4294901760
    %750 = vmatpush1.msra.mxu0 %v749
    %751 = vmatprep.subr.mxu0 0.0
    %v752 = vand.u32 %v48, 4294901760
    %753 = vmatpush1.msra.mxu0 %v752
    %754 = vmatprep.subr.mxu0 0.0
    %v755 = vand.u32 %v49, 4294901760
    %756 = vmatpush1.msra.mxu0 %v755
    %757 = vmatprep.subr.mxu0 0.0
    %v758 = vand.u32 %v50, 4294901760
    %759 = vmatpush1.msra.mxu0 %v758
    %760 = vmatprep.subr.mxu0 0.0
    %v761 = vand.u32 %v51, 4294901760
    %762 = vmatpush1.msra.mxu0 %v761
    %763 = vmatprep.subr.mxu0 0.0
    %v764 = vand.u32 %v52, 4294901760
    %765 = vmatpush1.msra.mxu0 %v764
    %766 = vmatprep.subr.mxu0 0.0
    %v767 = vand.u32 %v53, 4294901760
    %768 = vmatpush1.msra.mxu0 %v767
    %769 = vmatprep.subr.mxu0 0.0
    %v770 = vand.u32 %v54, 4294901760
    %771 = vmatpush1.msra.mxu0 %v770
    %772 = vmatprep.subr.mxu0 0.0
    %v773 = vand.u32 %v55, 4294901760
    %774 = vmatpush1.msra.mxu0 %v773
    %775 = vmatprep.subr.mxu0 0.0
    %v776 = vand.u32 %v56, 4294901760
    %777 = vmatpush1.msra.mxu0 %v776
    %778 = vmatprep.subr.mxu0 0.0
    %v779 = vand.u32 %v57, 4294901760
    %780 = vmatpush1.msra.mxu0 %v779
    %781 = vmatprep.subr.mxu0 0.0
    %v782 = vand.u32 %v58, 4294901760
    %783 = vmatpush1.msra.mxu0 %v782
    %784 = vmatprep.subr.mxu0 0.0
    %v785 = vand.u32 %v59, 4294901760
    %786 = vmatpush1.msra.mxu0 %v785
    %787 = vmatprep.subr.mxu0 0.0
    %v788 = vand.u32 %v60, 4294901760
    %789 = vmatpush1.msra.mxu0 %v788
    %790 = vmatprep.subr.mxu0 0.0
    %791 = vmatpush1.msra.mxu0 0.0
    %792 = vmatprep.subr.mxu0 0.0
    %793 = vmatpush1.msra.mxu0 0.0
    %794 = vmatprep.subr.mxu0 0.0
    %795 = vmatpush1.msra.mxu0 0.0
    %796 = vmatprep.subr.mxu0 0.0
    %797 = vmatpush1.msra.mxu0 0.0
    %798 = vmatprep.subr.mxu0 0.0
    %799 = vmatpush1.msra.mxu0 0.0
    %800 = vmatprep.subr.mxu0 0.0
    %801 = vmatpush1.msra.mxu0 0.0
    %802 = vmatprep.subr.mxu0 0.0
    %803 = vmatpush1.msra.mxu0 0.0
    %804 = vmatprep.subr.mxu0 0.0
    %805 = vmatpush1.msra.mxu0 0.0
    %806 = vmatprep.subr.mxu0 0.0
    %807 = vmatpush1.msra.mxu0 0.0
    %808 = vmatprep.subr.mxu0 0.0
    %809 = vmatpush1.msra.mxu0 0.0
    %810 = vmatprep.subr.mxu0 0.0
    %811 = vmatpush1.msra.mxu0 0.0
    %812 = vmatprep.subr.mxu0 0.0
    %813 = vmatpush1.msra.mxu0 0.0
    %814 = vmatprep.subr.mxu0 0.0
    %815 = vmatpush1.msra.mxu0 0.0
    %816 = vmatprep.subr.mxu0 0.0
    %817 = vmatpush1.msra.mxu0 0.0
    %818 = vmatprep.subr.mxu0 0.0
    %819 = vmatpush1.msra.mxu0 0.0
    %820 = vmatprep.subr.mxu0 0.0
    %821 = vmatpush1.msra.mxu0 0.0
    %822 = vmatprep.mubr.f32.mxu0 0.0
    %v823 = vand.u32 %v735, 4294901760
    %v824 = vsub.f32 %v735, %v823
    %v825 = vand.u32 %v824, 4294901760
    %v826 = vsub.f32 %v824, %v825
    %v827 = vand.u32 %v826, 4294901760
    %828 = vmatmul.mubr.f32.gmra.mrb[0].mxu0 %v827
    %v829 = vpop.f32.mrb[0].mxu0
    %v830 = vadd.f32 %v740, %v829
    %v831 = vpop.f32.mrb[0].mxu0
    %832 = vdwg.mxu0
    %833 = vmatprep.subr.mxu0 0.0
    %v834 = vand.u32 %v45, 4294901760
    %v835 = vsub.f32 %v45, %v834
    %v836 = vand.u32 %v835, 4294901760
    %v837 = vsub.f32 %v835, %v836
    %v838 = vand.u32 %v837, 4294901760
    %839 = vmatpush1.msra.mxu0 %v838
    %840 = vmatprep.subr.mxu0 0.0
    %v841 = vand.u32 %v46, 4294901760
    %v842 = vsub.f32 %v46, %v841
    %v843 = vand.u32 %v842, 4294901760
    %v844 = vsub.f32 %v842, %v843
    %v845 = vand.u32 %v844, 4294901760
    %846 = vmatpush1.msra.mxu0 %v845
    %847 = vmatprep.subr.mxu0 0.0
    %v848 = vand.u32 %v47, 4294901760
    %v849 = vsub.f32 %v47, %v848
    %v850 = vand.u32 %v849, 4294901760
    %v851 = vsub.f32 %v849, %v850
    %v852 = vand.u32 %v851, 4294901760
    %853 = vmatpush1.msra.mxu0 %v852
    %854 = vmatprep.subr.mxu0 0.0
    %v855 = vand.u32 %v48, 4294901760
    %v856 = vsub.f32 %v48, %v855
    %v857 = vand.u32 %v856, 4294901760
    %v858 = vsub.f32 %v856, %v857
    %v859 = vand.u32 %v858, 4294901760
    %860 = vmatpush1.msra.mxu0 %v859
    %861 = vmatprep.subr.mxu0 0.0
    %v862 = vand.u32 %v49, 4294901760
    %v863 = vsub.f32 %v49, %v862
    %v864 = vand.u32 %v863, 4294901760
    %v865 = vsub.f32 %v863, %v864
    %v866 = vand.u32 %v865, 4294901760
    %867 = vmatpush1.msra.mxu0 %v866
    %868 = vmatprep.subr.mxu0 0.0
    %v869 = vand.u32 %v50, 4294901760
    %v870 = vsub.f32 %v50, %v869
    %v871 = vand.u32 %v870, 4294901760
    %v872 = vsub.f32 %v870, %v871
    %v873 = vand.u32 %v872, 4294901760
    %874 = vmatpush1.msra.mxu0 %v873
    %875 = vmatprep.subr.mxu0 0.0
    %v876 = vand.u32 %v51, 4294901760
    %v877 = vsub.f32 %v51, %v876
    %v878 = vand.u32 %v877, 4294901760
    %v879 = vsub.f32 %v877, %v878
    %v880 = vand.u32 %v879, 4294901760
    %881 = vmatpush1.msra.mxu0 %v880
    %882 = vmatprep.subr.mxu0 0.0
    %v883 = vand.u32 %v52, 4294901760
    %v884 = vsub.f32 %v52, %v883
    %v885 = vand.u32 %v884, 4294901760
    %v886 = vsub.f32 %v884, %v885
    %v887 = vand.u32 %v886, 4294901760
    %888 = vmatpush1.msra.mxu0 %v887
    %889 = vmatprep.subr.mxu0 0.0
    %v890 = vand.u32 %v53, 4294901760
    %v891 = vsub.f32 %v53, %v890
    %v892 = vand.u32 %v891, 4294901760
    %v893 = vsub.f32 %v891, %v892
    %v894 = vand.u32 %v893, 4294901760
    %895 = vmatpush1.msra.mxu0 %v894
    %896 = vmatprep.subr.mxu0 0.0
    %v897 = vand.u32 %v54, 4294901760
    %v898 = vsub.f32 %v54, %v897
    %v899 = vand.u32 %v898, 4294901760
    %v900 = vsub.f32 %v898, %v899
    %v901 = vand.u32 %v900, 4294901760
    %902 = vmatpush1.msra.mxu0 %v901
    %903 = vmatprep.subr.mxu0 0.0
    %v904 = vand.u32 %v55, 4294901760
    %v905 = vsub.f32 %v55, %v904
    %v906 = vand.u32 %v905, 4294901760
    %v907 = vsub.f32 %v905, %v906
    %v908 = vand.u32 %v907, 4294901760
    %909 = vmatpush1.msra.mxu0 %v908
    %910 = vmatprep.subr.mxu0 0.0
    %v911 = vand.u32 %v56, 4294901760
    %v912 = vsub.f32 %v56, %v911
    %v913 = vand.u32 %v912, 4294901760
    %v914 = vsub.f32 %v912, %v913
    %v915 = vand.u32 %v914, 4294901760
    %916 = vmatpush1.msra.mxu0 %v915
    %917 = vmatprep.subr.mxu0 0.0
    %v918 = vand.u32 %v57, 4294901760
    %v919 = vsub.f32 %v57, %v918
    %v920 = vand.u32 %v919, 4294901760
    %v921 = vsub.f32 %v919, %v920
    %v922 = vand.u32 %v921, 4294901760
    %923 = vmatpush1.msra.mxu0 %v922
    %924 = vmatprep.subr.mxu0 0.0
    %v925 = vand.u32 %v58, 4294901760
    %v926 = vsub.f32 %v58, %v925
    %v927 = vand.u32 %v926, 4294901760
    %v928 = vsub.f32 %v926, %v927
    %v929 = vand.u32 %v928, 4294901760
    %930 = vmatpush1.msra.mxu0 %v929
    %931 = vmatprep.subr.mxu0 0.0
    %v932 = vand.u32 %v59, 4294901760
    %v933 = vsub.f32 %v59, %v932
    %v934 = vand.u32 %v933, 4294901760
    %v935 = vsub.f32 %v933, %v934
    %v936 = vand.u32 %v935, 4294901760
    %937 = vmatpush1.msra.mxu0 %v936
    %938 = vmatprep.subr.mxu0 0.0
    %v939 = vand.u32 %v60, 4294901760
    %v940 = vsub.f32 %v60, %v939
    %v941 = vand.u32 %v940, 4294901760
    %v942 = vsub.f32 %v940, %v941
    %v943 = vand.u32 %v942, 4294901760
    %944 = vmatpush1.msra.mxu0 %v943
    %945 = vmatprep.subr.mxu0 0.0
    %946 = vmatpush1.msra.mxu0 0.0
    %947 = vmatprep.subr.mxu0 0.0
    %948 = vmatpush1.msra.mxu0 0.0
    %949 = vmatprep.subr.mxu0 0.0
    %950 = vmatpush1.msra.mxu0 0.0
    %951 = vmatprep.subr.mxu0 0.0
    %952 = vmatpush1.msra.mxu0 0.0
    %953 = vmatprep.subr.mxu0 0.0
    %954 = vmatpush1.msra.mxu0 0.0
    %955 = vmatprep.subr.mxu0 0.0
    %956 = vmatpush1.msra.mxu0 0.0
    %957 = vmatprep.subr.mxu0 0.0
    %958 = vmatpush1.msra.mxu0 0.0
    %959 = vmatprep.subr.mxu0 0.0
    %960 = vmatpush1.msra.mxu0 0.0
    %961 = vmatprep.subr.mxu0 0.0
    %962 = vmatpush1.msra.mxu0 0.0
    %963 = vmatprep.subr.mxu0 0.0
    %964 = vmatpush1.msra.mxu0 0.0
    %965 = vmatprep.subr.mxu0 0.0
    %966 = vmatpush1.msra.mxu0 0.0
    %967 = vmatprep.subr.mxu0 0.0
    %968 = vmatpush1.msra.mxu0 0.0
    %969 = vmatprep.subr.mxu0 0.0
    %970 = vmatpush1.msra.mxu0 0.0
    %971 = vmatprep.subr.mxu0 0.0
    %972 = vmatpush1.msra.mxu0 0.0
    %973 = vmatprep.subr.mxu0 0.0
    %974 = vmatpush1.msra.mxu0 0.0
    %975 = vmatprep.subr.mxu0 0.0
    %976 = vmatpush1.msra.mxu0 0.0
    %977 = vmatprep.mubr.f32.mxu0 0.0
    %v978 = vand.u32 %v735, 4294901760
    %979 = vmatmul.mubr.f32.gmra.mrb[0].mxu0 %v978
    %v980 = vpop.f32.mrb[0].mxu0
    %v981 = vadd.f32 %v830, %v980
    %v982 = vpop.f32.mrb[0].mxu0
    %983 = vdwg.mxu0
    %984 = vmatprep.subr.mxu0 0.0
    %v985 = vand.u32 %v45, 4294901760
    %v986 = vsub.f32 %v45, %v985
    %987 = vmatpush1.msra.mxu0 %v986
    %988 = vmatprep.subr.mxu0 0.0
    %v989 = vand.u32 %v46, 4294901760
    %v990 = vsub.f32 %v46, %v989
    %991 = vmatpush1.msra.mxu0 %v990
    %992 = vmatprep.subr.mxu0 0.0
    %v993 = vand.u32 %v47, 4294901760
    %v994 = vsub.f32 %v47, %v993
    %995 = vmatpush1.msra.mxu0 %v994
    %996 = vmatprep.subr.mxu0 0.0
    %v997 = vand.u32 %v48, 4294901760
    %v998 = vsub.f32 %v48, %v997
    %999 = vmatpush1.msra.mxu0 %v998
    %1000 = vmatprep.subr.mxu0 0.0
    %v1001 = vand.u32 %v49, 4294901760
    %v1002 = vsub.f32 %v49, %v1001
    %1003 = vmatpush1.msra.mxu0 %v1002
    %1004 = vmatprep.subr.mxu0 0.0
    %v1005 = vand.u32 %v50, 4294901760
    %v1006 = vsub.f32 %v50, %v1005
    %1007 = vmatpush1.msra.mxu0 %v1006
    %1008 = vmatprep.subr.mxu0 0.0
    %v1009 = vand.u32 %v51, 4294901760
    %v1010 = vsub.f32 %v51, %v1009
    %1011 = vmatpush1.msra.mxu0 %v1010
    %1012 = vmatprep.subr.mxu0 0.0
    %v1013 = vand.u32 %v52, 4294901760
    %v1014 = vsub.f32 %v52, %v1013
    %1015 = vmatpush1.msra.mxu0 %v1014
    %1016 = vmatprep.subr.mxu0 0.0
    %v1017 = vand.u32 %v53, 4294901760
    %v1018 = vsub.f32 %v53, %v1017
    %1019 = vmatpush1.msra.mxu0 %v1018
    %1020 = vmatprep.subr.mxu0 0.0
    %v1021 = vand.u32 %v54, 4294901760
    %v1022 = vsub.f32 %v54, %v1021
    %1023 = vmatpush1.msra.mxu0 %v1022
    %1024 = vmatprep.subr.mxu0 0.0
    %v1025 = vand.u32 %v55, 4294901760
    %v1026 = vsub.f32 %v55, %v1025
    %1027 = vmatpush1.msra.mxu0 %v1026
    %1028 = vmatprep.subr.mxu0 0.0
    %v1029 = vand.u32 %v56, 4294901760
    %v1030 = vsub.f32 %v56, %v1029
    %1031 = vmatpush1.msra.mxu0 %v1030
    %1032 = vmatprep.subr.mxu0 0.0
    %v1033 = vand.u32 %v57, 4294901760
    %v1034 = vsub.f32 %v57, %v1033
    %1035 = vmatpush1.msra.mxu0 %v1034
    %1036 = vmatprep.subr.mxu0 0.0
    %v1037 = vand.u32 %v58, 4294901760
    %v1038 = vsub.f32 %v58, %v1037
    %1039 = vmatpush1.msra.mxu0 %v1038
    %1040 = vmatprep.subr.mxu0 0.0
    %v1041 = vand.u32 %v59, 4294901760
    %v1042 = vsub.f32 %v59, %v1041
    %1043 = vmatpush1.msra.mxu0 %v1042
    %1044 = vmatprep.subr.mxu0 0.0
    %v1045 = vand.u32 %v60, 4294901760
    %v1046 = vsub.f32 %v60, %v1045
    %1047 = vmatpush1.msra.mxu0 %v1046
    %1048 = vmatprep.subr.mxu0 0.0
    %1049 = vmatpush1.msra.mxu0 0.0
    %1050 = vmatprep.subr.mxu0 0.0
    %1051 = vmatpush1.msra.mxu0 0.0
    %1052 = vmatprep.subr.mxu0 0.0
    %1053 = vmatpush1.msra.mxu0 0.0
    %1054 = vmatprep.subr.mxu0 0.0
    %1055 = vmatpush1.msra.mxu0 0.0
    %1056 = vmatprep.subr.mxu0 0.0
    %1057 = vmatpush1.msra.mxu0 0.0
    %1058 = vmatprep.subr.mxu0 0.0
    %1059 = vmatpush1.msra.mxu0 0.0
    %1060 = vmatprep.subr.mxu0 0.0
    %1061 = vmatpush1.msra.mxu0 0.0
    %1062 = vmatprep.subr.mxu0 0.0
    %1063 = vmatpush1.msra.mxu0 0.0
    %1064 = vmatprep.subr.mxu0 0.0
    %1065 = vmatpush1.msra.mxu0 0.0
    %1066 = vmatprep.subr.mxu0 0.0
    %1067 = vmatpush1.msra.mxu0 0.0
    %1068 = vmatprep.subr.mxu0 0.0
    %1069 = vmatpush1.msra.mxu0 0.0
    %1070 = vmatprep.subr.mxu0 0.0
    %1071 = vmatpush1.msra.mxu0 0.0
    %1072 = vmatprep.subr.mxu0 0.0
    %1073 = vmatpush1.msra.mxu0 0.0
    %1074 = vmatprep.subr.mxu0 0.0
    %1075 = vmatpush1.msra.mxu0 0.0
    %1076 = vmatprep.subr.mxu0 0.0
    %1077 = vmatpush1.msra.mxu0 0.0
    %1078 = vmatprep.subr.mxu0 0.0
    %1079 = vmatpush1.msra.mxu0 0.0
    %1080 = vmatprep.mubr.f32.mxu0 0.0
    %v1081 = vand.u32 %v735, 4294901760
    %v1082 = vsub.f32 %v735, %v1081
    %1083 = vmatmul.mubr.f32.gmra.mrb[0].mxu0 %v1082
    %v1084 = vpop.f32.mrb[0].mxu0
    %v1085 = vadd.f32 %v981, %v1084
    %v1086 = vpop.f32.mrb[0].mxu0
    %1087 = vdwg.mxu0
    %1088 = vmatprep.subr.mxu0 0.0
    %v1089 = vand.u32 %v45, 4294901760
    %1090 = vmatpush1.msra.mxu0 %v1089
    %1091 = vmatprep.subr.mxu0 0.0
    %v1092 = vand.u32 %v46, 4294901760
    %1093 = vmatpush1.msra.mxu0 %v1092
    %1094 = vmatprep.subr.mxu0 0.0
    %v1095 = vand.u32 %v47, 4294901760
    %1096 = vmatpush1.msra.mxu0 %v1095
    %1097 = vmatprep.subr.mxu0 0.0
    %v1098 = vand.u32 %v48, 4294901760
    %1099 = vmatpush1.msra.mxu0 %v1098
    %1100 = vmatprep.subr.mxu0 0.0
    %v1101 = vand.u32 %v49, 4294901760
    %1102 = vmatpush1.msra.mxu0 %v1101
    %1103 = vmatprep.subr.mxu0 0.0
    %v1104 = vand.u32 %v50, 4294901760
    %1105 = vmatpush1.msra.mxu0 %v1104
    %1106 = vmatprep.subr.mxu0 0.0
    %v1107 = vand.u32 %v51, 4294901760
    %1108 = vmatpush1.msra.mxu0 %v1107
    %1109 = vmatprep.subr.mxu0 0.0
    %v1110 = vand.u32 %v52, 4294901760
    %1111 = vmatpush1.msra.mxu0 %v1110
    %1112 = vmatprep.subr.mxu0 0.0
    %v1113 = vand.u32 %v53, 4294901760
    %1114 = vmatpush1.msra.mxu0 %v1113
    %1115 = vmatprep.subr.mxu0 0.0
    %v1116 = vand.u32 %v54, 4294901760
    %1117 = vmatpush1.msra.mxu0 %v1116
    %1118 = vmatprep.subr.mxu0 0.0
    %v1119 = vand.u32 %v55, 4294901760
    %1120 = vmatpush1.msra.mxu0 %v1119
    %1121 = vmatprep.subr.mxu0 0.0
    %v1122 = vand.u32 %v56, 4294901760
    %1123 = vmatpush1.msra.mxu0 %v1122
    %1124 = vmatprep.subr.mxu0 0.0
    %v1125 = vand.u32 %v57, 4294901760
    %1126 = vmatpush1.msra.mxu0 %v1125
    %1127 = vmatprep.subr.mxu0 0.0
    %v1128 = vand.u32 %v58, 4294901760
    %1129 = vmatpush1.msra.mxu0 %v1128
    %1130 = vmatprep.subr.mxu0 0.0
    %v1131 = vand.u32 %v59, 4294901760
    %1132 = vmatpush1.msra.mxu0 %v1131
    %1133 = vmatprep.subr.mxu0 0.0
    %v1134 = vand.u32 %v60, 4294901760
    %1135 = vmatpush1.msra.mxu0 %v1134
    %1136 = vmatprep.subr.mxu0 0.0
    %1137 = vmatpush1.msra.mxu0 0.0
    %1138 = vmatprep.subr.mxu0 0.0
    %1139 = vmatpush1.msra.mxu0 0.0
    %1140 = vmatprep.subr.mxu0 0.0
    %1141 = vmatpush1.msra.mxu0 0.0
    %1142 = vmatprep.subr.mxu0 0.0
    %1143 = vmatpush1.msra.mxu0 0.0
    %1144 = vmatprep.subr.mxu0 0.0
    %1145 = vmatpush1.msra.mxu0 0.0
    %1146 = vmatprep.subr.mxu0 0.0
    %1147 = vmatpush1.msra.mxu0 0.0
    %1148 = vmatprep.subr.mxu0 0.0
    %1149 = vmatpush1.msra.mxu0 0.0
    %1150 = vmatprep.subr.mxu0 0.0
    %1151 = vmatpush1.msra.mxu0 0.0
    %1152 = vmatprep.subr.mxu0 0.0
    %1153 = vmatpush1.msra.mxu0 0.0
    %1154 = vmatprep.subr.mxu0 0.0
    %1155 = vmatpush1.msra.mxu0 0.0
    %1156 = vmatprep.subr.mxu0 0.0
    %1157 = vmatpush1.msra.mxu0 0.0
    %1158 = vmatprep.subr.mxu0 0.0
    %1159 = vmatpush1.msra.mxu0 0.0
    %1160 = vmatprep.subr.mxu0 0.0
    %1161 = vmatpush1.msra.mxu0 0.0
    %1162 = vmatprep.subr.mxu0 0.0
    %1163 = vmatpush1.msra.mxu0 0.0
    %1164 = vmatprep.subr.mxu0 0.0
    %1165 = vmatpush1.msra.mxu0 0.0
    %1166 = vmatprep.subr.mxu0 0.0
    %1167 = vmatpush1.msra.mxu0 0.0
    %1168 = vmatprep.mubr.f32.mxu0 0.0
    %v1169 = vand.u32 %v735, 4294901760
    %v1170 = vsub.f32 %v735, %v1169
    %v1171 = vand.u32 %v1170, 4294901760
    %1172 = vmatmul.mubr.f32.gmra.mrb[0].mxu0 %v1171
    %v1173 = vpop.f32.mrb[0].mxu0
    %v1174 = vadd.f32 %v1085, %v1173
    %v1175 = vpop.f32.mrb[0].mxu0
    %1176 = vdwg.mxu0
    %1177 = vmatprep.subr.mxu0 0.0
    %v1178 = vand.u32 %v45, 4294901760
    %v1179 = vsub.f32 %v45, %v1178
    %v1180 = vand.u32 %v1179, 4294901760
    %1181 = vmatpush1.msra.mxu0 %v1180
    %1182 = vmatprep.subr.mxu0 0.0
    %v1183 = vand.u32 %v46, 4294901760
    %v1184 = vsub.f32 %v46, %v1183
    %v1185 = vand.u32 %v1184, 4294901760
    %1186 = vmatpush1.msra.mxu0 %v1185
    %1187 = vmatprep.subr.mxu0 0.0
    %v1188 = vand.u32 %v47, 4294901760
    %v1189 = vsub.f32 %v47, %v1188
    %v1190 = vand.u32 %v1189, 4294901760
    %1191 = vmatpush1.msra.mxu0 %v1190
    %1192 = vmatprep.subr.mxu0 0.0
    %v1193 = vand.u32 %v48, 4294901760
    %v1194 = vsub.f32 %v48, %v1193
    %v1195 = vand.u32 %v1194, 4294901760
    %1196 = vmatpush1.msra.mxu0 %v1195
    %1197 = vmatprep.subr.mxu0 0.0
    %v1198 = vand.u32 %v49, 4294901760
    %v1199 = vsub.f32 %v49, %v1198
    %v1200 = vand.u32 %v1199, 4294901760
    %1201 = vmatpush1.msra.mxu0 %v1200
    %1202 = vmatprep.subr.mxu0 0.0
    %v1203 = vand.u32 %v50, 4294901760
    %v1204 = vsub.f32 %v50, %v1203
    %v1205 = vand.u32 %v1204, 4294901760
    %1206 = vmatpush1.msra.mxu0 %v1205
    %1207 = vmatprep.subr.mxu0 0.0
    %v1208 = vand.u32 %v51, 4294901760
    %v1209 = vsub.f32 %v51, %v1208
    %v1210 = vand.u32 %v1209, 4294901760
    %1211 = vmatpush1.msra.mxu0 %v1210
    %1212 = vmatprep.subr.mxu0 0.0
    %v1213 = vand.u32 %v52, 4294901760
    %v1214 = vsub.f32 %v52, %v1213
    %v1215 = vand.u32 %v1214, 4294901760
    %1216 = vmatpush1.msra.mxu0 %v1215
    %1217 = vmatprep.subr.mxu0 0.0
    %v1218 = vand.u32 %v53, 4294901760
    %v1219 = vsub.f32 %v53, %v1218
    %v1220 = vand.u32 %v1219, 4294901760
    %1221 = vmatpush1.msra.mxu0 %v1220
    %1222 = vmatprep.subr.mxu0 0.0
    %v1223 = vand.u32 %v54, 4294901760
    %v1224 = vsub.f32 %v54, %v1223
    %v1225 = vand.u32 %v1224, 4294901760
    %1226 = vmatpush1.msra.mxu0 %v1225
    %1227 = vmatprep.subr.mxu0 0.0
    %v1228 = vand.u32 %v55, 4294901760
    %v1229 = vsub.f32 %v55, %v1228
    %v1230 = vand.u32 %v1229, 4294901760
    %1231 = vmatpush1.msra.mxu0 %v1230
    %1232 = vmatprep.subr.mxu0 0.0
    %v1233 = vand.u32 %v56, 4294901760
    %v1234 = vsub.f32 %v56, %v1233
    %v1235 = vand.u32 %v1234, 4294901760
    %1236 = vmatpush1.msra.mxu0 %v1235
    %1237 = vmatprep.subr.mxu0 0.0
    %v1238 = vand.u32 %v57, 4294901760
    %v1239 = vsub.f32 %v57, %v1238
    %v1240 = vand.u32 %v1239, 4294901760
    %1241 = vmatpush1.msra.mxu0 %v1240
    %1242 = vmatprep.subr.mxu0 0.0
    %v1243 = vand.u32 %v58, 4294901760
    %v1244 = vsub.f32 %v58, %v1243
    %v1245 = vand.u32 %v1244, 4294901760
    %1246 = vmatpush1.msra.mxu0 %v1245
    %1247 = vmatprep.subr.mxu0 0.0
    %v1248 = vand.u32 %v59, 4294901760
    %v1249 = vsub.f32 %v59, %v1248
    %v1250 = vand.u32 %v1249, 4294901760
    %1251 = vmatpush1.msra.mxu0 %v1250
    %1252 = vmatprep.subr.mxu0 0.0
    %v1253 = vand.u32 %v60, 4294901760
    %v1254 = vsub.f32 %v60, %v1253
    %v1255 = vand.u32 %v1254, 4294901760
    %1256 = vmatpush1.msra.mxu0 %v1255
    %1257 = vmatprep.subr.mxu0 0.0
    %1258 = vmatpush1.msra.mxu0 0.0
    %1259 = vmatprep.subr.mxu0 0.0
    %1260 = vmatpush1.msra.mxu0 0.0
    %1261 = vmatprep.subr.mxu0 0.0
    %1262 = vmatpush1.msra.mxu0 0.0
    %1263 = vmatprep.subr.mxu0 0.0
    %1264 = vmatpush1.msra.mxu0 0.0
    %1265 = vmatprep.subr.mxu0 0.0
    %1266 = vmatpush1.msra.mxu0 0.0
    %1267 = vmatprep.subr.mxu0 0.0
    %1268 = vmatpush1.msra.mxu0 0.0
    %1269 = vmatprep.subr.mxu0 0.0
    %1270 = vmatpush1.msra.mxu0 0.0
    %1271 = vmatprep.subr.mxu0 0.0
    %1272 = vmatpush1.msra.mxu0 0.0
    %1273 = vmatprep.subr.mxu0 0.0
    %1274 = vmatpush1.msra.mxu0 0.0
    %1275 = vmatprep.subr.mxu0 0.0
    %1276 = vmatpush1.msra.mxu0 0.0
    %1277 = vmatprep.subr.mxu0 0.0
    %1278 = vmatpush1.msra.mxu0 0.0
    %1279 = vmatprep.subr.mxu0 0.0
    %1280 = vmatpush1.msra.mxu0 0.0
    %1281 = vmatprep.subr.mxu0 0.0
    %1282 = vmatpush1.msra.mxu0 0.0
    %1283 = vmatprep.subr.mxu0 0.0
    %1284 = vmatpush1.msra.mxu0 0.0
    %1285 = vmatprep.subr.mxu0 0.0
    %1286 = vmatpush1.msra.mxu0 0.0
    %1287 = vmatprep.subr.mxu0 0.0
    %1288 = vmatpush1.msra.mxu0 0.0
    %1289 = vmatprep.mubr.f32.mxu0 0.0
    %v1290 = vand.u32 %v735, 4294901760
    %1291 = vmatmul.mubr.f32.gmra.mrb[0].mxu0 %v1290
    %v1292 = vpop.f32.mrb[0].mxu0
    %v1293 = vadd.f32 %v1174, %v1292
    %v1294 = vpop.f32.mrb[0].mxu0
    %1295 = vdwg.mxu0
    %1296 = vmatprep.subr.mxu0 0.0
    %v1297 = vand.u32 %v45, 4294901760
    %1298 = vmatpush1.msra.mxu0 %v1297
    %1299 = vmatprep.subr.mxu0 0.0
    %v1300 = vand.u32 %v46, 4294901760
    %1301 = vmatpush1.msra.mxu0 %v1300
    %1302 = vmatprep.subr.mxu0 0.0
    %v1303 = vand.u32 %v47, 4294901760
    %1304 = vmatpush1.msra.mxu0 %v1303
    %1305 = vmatprep.subr.mxu0 0.0
    %v1306 = vand.u32 %v48, 4294901760
    %1307 = vmatpush1.msra.mxu0 %v1306
    %1308 = vmatprep.subr.mxu0 0.0
    %v1309 = vand.u32 %v49, 4294901760
    %1310 = vmatpush1.msra.mxu0 %v1309
    %1311 = vmatprep.subr.mxu0 0.0
    %v1312 = vand.u32 %v50, 4294901760
    %1313 = vmatpush1.msra.mxu0 %v1312
    %1314 = vmatprep.subr.mxu0 0.0
    %v1315 = vand.u32 %v51, 4294901760
    %1316 = vmatpush1.msra.mxu0 %v1315
    %1317 = vmatprep.subr.mxu0 0.0
    %v1318 = vand.u32 %v52, 4294901760
    %1319 = vmatpush1.msra.mxu0 %v1318
    %1320 = vmatprep.subr.mxu0 0.0
    %v1321 = vand.u32 %v53, 4294901760
    %1322 = vmatpush1.msra.mxu0 %v1321
    %1323 = vmatprep.subr.mxu0 0.0
    %v1324 = vand.u32 %v54, 4294901760
    %1325 = vmatpush1.msra.mxu0 %v1324
    %1326 = vmatprep.subr.mxu0 0.0
    %v1327 = vand.u32 %v55, 4294901760
    %1328 = vmatpush1.msra.mxu0 %v1327
    %1329 = vmatprep.subr.mxu0 0.0
    %v1330 = vand.u32 %v56, 4294901760
    %1331 = vmatpush1.msra.mxu0 %v1330
    %1332 = vmatprep.subr.mxu0 0.0
    %v1333 = vand.u32 %v57, 4294901760
    %1334 = vmatpush1.msra.mxu0 %v1333
    %1335 = vmatprep.subr.mxu0 0.0
    %v1336 = vand.u32 %v58, 4294901760
    %1337 = vmatpush1.msra.mxu0 %v1336
    %1338 = vmatprep.subr.mxu0 0.0
    %v1339 = vand.u32 %v59, 4294901760
    %1340 = vmatpush1.msra.mxu0 %v1339
    %1341 = vmatprep.subr.mxu0 0.0
    %v1342 = vand.u32 %v60, 4294901760
    %1343 = vmatpush1.msra.mxu0 %v1342
    %1344 = vmatprep.subr.mxu0 0.0
    %1345 = vmatpush1.msra.mxu0 0.0
    %1346 = vmatprep.subr.mxu0 0.0
    %1347 = vmatpush1.msra.mxu0 0.0
    %1348 = vmatprep.subr.mxu0 0.0
    %1349 = vmatpush1.msra.mxu0 0.0
    %1350 = vmatprep.subr.mxu0 0.0
    %1351 = vmatpush1.msra.mxu0 0.0
    %1352 = vmatprep.subr.mxu0 0.0
    %1353 = vmatpush1.msra.mxu0 0.0
    %1354 = vmatprep.subr.mxu0 0.0
    %1355 = vmatpush1.msra.mxu0 0.0
    %1356 = vmatprep.subr.mxu0 0.0
    %1357 = vmatpush1.msra.mxu0 0.0
    %1358 = vmatprep.subr.mxu0 0.0
    %1359 = vmatpush1.msra.mxu0 0.0
    %1360 = vmatprep.subr.mxu0 0.0
    %1361 = vmatpush1.msra.mxu0 0.0
    %1362 = vmatprep.subr.mxu0 0.0
    %1363 = vmatpush1.msra.mxu0 0.0
    %1364 = vmatprep.subr.mxu0 0.0
    %1365 = vmatpush1.msra.mxu0 0.0
    %1366 = vmatprep.subr.mxu0 0.0
    %1367 = vmatpush1.msra.mxu0 0.0
    %1368 = vmatprep.subr.mxu0 0.0
    %1369 = vmatpush1.msra.mxu0 0.0
    %1370 = vmatprep.subr.mxu0 0.0
    %1371 = vmatpush1.msra.mxu0 0.0
    %1372 = vmatprep.subr.mxu0 0.0
    %1373 = vmatpush1.msra.mxu0 0.0
    %1374 = vmatprep.subr.mxu0 0.0
    %1375 = vmatpush1.msra.mxu0 0.0
    %1376 = vmatprep.mubr.f32.mxu0 0.0
    %v1377 = vand.u32 %v735, 4294901760
    %1378 = vmatmul.mubr.f32.gmra.mrb[0].mxu0 %v1377
    %v1379 = vpop.f32.mrb[0].mxu0
    %v1380 = vadd.f32 %v1293, %v1379
    %v1381 = vpop.f32.mrb[0].mxu0
    %1382 = vdwg.mxu0
    %v1383 = vmax.f32 %v1380, 0.0
    %1385 = vrot.lane.b32.xlu0 %v1383, 1
    %v1386 = vpop.permute.xlu0 %1385
    %v1388 = vmul.f32 %v64, %v1386
    %v1389 = vmul.f32 %v64, %v64
    %v1390 = vmul.f32 %v1389, %v1386
    %1392 = vrot.lane.b32.xlu0 %v1390, 127
    %v1393 = vpop.permute.xlu0 %1392
    %v1395 = vadd.f32 %v1388, %v1393
    %1396 = vrot.lane.b32.xlu0 %v1383, 127
    %v1397 = vpop.permute.xlu0 %1396
    %v1399 = vadd.f32 %v1395, %v1397
    %1401 = vrot.lane.b32.xlu0 %v1399, 127
    %v1402 = vpop.permute.xlu0 %1401
    %vm1404 = vcmask 7168
    %1405 = vst.msk [vmem:[%s7] sm:$0xff] %vm1404, %v1402
    %1406 = vst [vmem:[#allocation2] sm:$0xff] %v735
    // Predicated region
    $region30: #{tpu_custom_call.1} parent=1 // pred_check
      _
    $region31: #{tpu_custom_call.1} parent=1 // pred_check_branch
      %1408 = sbr.rel (0) target = $region33
    $region32: #{tpu_custom_call.1} parent=1 // pred_region
      _
    $region33: #{tpu_custom_call.1} parent=1 // pred_fallthru
      _
    // Predicated region
    $region34: #{tpu_custom_call.1} parent=1 // pred_check
      _
    $region35: #{tpu_custom_call.1} parent=1 // pred_check_branch
      %1410 = sbr.rel (0) target = $region37
    $region36: #{tpu_custom_call.1} parent=1 // pred_region
      %s1412 = ssub.s32 128, 128
      %1413 = vsyncadd [#allocation3], %s1412
      %s1415 = sshll.u32 [#allocation2], 4
      %s1416 = int_to_ptr.vmem [resolvable:$true] %s1415
      %1418 = dma.vmem_to_hbm [thread:$0]  %s1416, 128, %s8, [#allocation3]
    $region37: #{tpu_custom_call.1} parent=1 // pred_fallthru
      _
    // Predicated region
    $region38: #{tpu_custom_call.1} parent=1 // pred_check
      _
    $region39: #{tpu_custom_call.1} parent=1 // pred_check_branch
      %1420 = sbr.rel (0) target = $region41
    $region40: #{tpu_custom_call.1} parent=1 // pred_region
      _
    $region41: #{tpu_custom_call.1} parent=1 // pred_fallthru
      _
    // Predicated region
    $region42: #{tpu_custom_call.1} parent=1 // pred_check
      _
    $region43: #{tpu_custom_call.1} parent=1 // pred_check_branch
      %1422 = sbr.rel (0) target = $region45
    $region44: #{tpu_custom_call.1} parent=1 // pred_region
      %1423 = dma.done [#allocation3], 128
    $region45: #{tpu_custom_call.1} parent=1 // pred_fallthru
      _
    %1424 = vsyncpa [#allocation3], 1

</llo_original>
